<compile_context>
chip_gen: v7x
topology: tpu7x:2x2x1
jax: 0.10.0
libtpu: 0.0.40
codegen_flags: <defaults>
</compile_context>

<pallas_src>
import functools

import jax
import jax.numpy as jnp
import numpy as np
from jax.experimental import pallas as pl
from jax.experimental.pallas import tpu as pltpu


# ---------------------------------------------------------------------------
# Kernel
# ---------------------------------------------------------------------------
def _paircon_kernel(feats_ref, stats_ref, *maybe_neg_ref,
                    batch_size: int, block_rows: int, temperature: float,
                    neg_width: int, precision):
    neg_ref = maybe_neg_ref[0] if maybe_neg_ref else None

    B = batch_size
    two_b = 2 * B
    tm = block_rows
    inv_t = jnp.float32(1.0 / temperature)

    row0 = pl.multiple_of(pl.program_id(0) * tm, tm)

    feats = feats_ref[...]                              # (2B, D) resident RHS
    lhs = feats_ref[pl.ds(row0, tm), :]                 # (tm, D) row tile (same block)

    # logits[r, j] = <lhs[r], feats[j]> / T ; contract last dims -> no transpose.
    sim = jax.lax.dot_general(
        lhs, feats,
        dimension_numbers=(((1,), (1,)), ((), ())),
        preferred_element_type=jnp.float32,
        precision=precision)
    logits = sim * inv_t                                # (tm, 2B)
    expsim = jnp.exp(logits)                            # assumes L2-normalized feats

    # Per-row global index g, dropped column d = g % B, positive partner column.
    r = jax.lax.broadcasted_iota(jnp.int32, (tm, 1), 0)
    g = r + row0
    first_half = g < B
    d = jnp.where(first_half, g, g - B)                 # in [0, B)
    partner = jnp.where(first_half, g + B, g - B)

    c = jax.lax.broadcasted_iota(jnp.int32, (tm, two_b), 1)

    # Positive logit = logits[r, partner[r]]  (select + lane reduction).
    pos_logit = jnp.sum(jnp.where(c == partner, logits, 0.0),
                        axis=-1, keepdims=True)         # (tm, 1)
    pos = jnp.exp(pos_logit)

    # Ng: zero-mask the self (d) and partner (d+B) columns, then lane-reduce.
    # (No catastrophic-cancellation rowsum trick; no compaction needed here.)
    drop = (c == d) | (c == d + B)
    ng = jnp.sum(jnp.where(drop, 0.0, expsim), axis=-1, keepdims=True)

    # -log(pos / (Ng + pos)) == log(Ng + pos) - log(pos); log(pos) == pos_logit.
    loss_row = jnp.log(ng + pos) - pos_logit

    # Merged per-row stats block: col 0 = pos, col 1 = Ng, col 2 = loss_row.
    col = jax.lax.broadcasted_iota(jnp.int32, (tm, 3), 1)
    stats_ref[...] = jnp.where(col == 0, pos, jnp.where(col == 1, ng, loss_row))

    if neg_ref is not None:
        # masked_select compaction: row g keeps every column except d and d + B,
        # in original order -> select among three shifted views of the row.
        k = jax.lax.broadcasted_iota(jnp.int32, (tm, two_b - 2), 1)
        s0 = expsim[:, 0:two_b - 2]
        s1 = expsim[:, 1:two_b - 1]
        s2 = expsim[:, 2:two_b]
        neg = jnp.where(k < d, s0, jnp.where(k < d + (B - 1), s1, s2))
        if neg_width > two_b - 2:
            neg_ref[...] = jnp.zeros_like(neg_ref)      # zero the lane padding
            neg_ref[:, : two_b - 2] = neg
        else:
            neg_ref[...] = neg


# ---------------------------------------------------------------------------
# Tiling / VMEM helpers
# ---------------------------------------------------------------------------
def _round_up(x: int, m: int) -> int:
    return ((x + m - 1) // m) * m


def _vmem_capacity_bytes() -> int:
    try:
        info = pltpu.get_tpu_info()
        cap = getattr(info, "vmem_capacity_bytes", None)
        if cap:
            return int(cap)
    except Exception:
        pass
    return 64 * 1024 * 1024  # conservative (v7x per-TC)


def _vmem_estimate_bytes(two_b, d, tm, neg_width, emit_neg, rhs_bufs=2):
    f32 = 4
    rhs = rhs_bufs * _round_up(two_b, 8) * _round_up(d, 128) * f32
    stats = 2 * _round_up(tm, 8) * 128 * f32
    neg = (2 * _round_up(tm, 8) * _round_up(max(neg_width, 1), 128) * f32) if emit_neg else 0
    temps = 8 * _round_up(tm, 8) * _round_up(two_b, 128) * f32  # logits/exp/select temporaries
    return rhs + stats + neg + temps


def _pick_block_rows(two_b, d, emit_neg, neg_width, budget_bytes) -> int:
    cands = [c for c in (1024, 512, 256, 128, 64, 32, 16, 8) if two_b % c == 0]
    if not cands:
        return two_b  # odd small batch: single full-height block
    fits = [c for c in cands
            if _vmem_estimate_bytes(two_b, d, c, neg_width, emit_neg) <= budget_bytes]
    if not fits:
        fits = [min(cands)]
    # Prefer >= 4 grid steps (megacore sharding + DMA/compute overlap), then >= 2.
    for min_steps in (4, 2, 1):
        sel = [c for c in fits if two_b // c >= min_steps]
        if sel:
            return max(sel)
    return max(fits)


# ---------------------------------------------------------------------------
# Wrapper
# ---------------------------------------------------------------------------
def pair_con_loss(features_1, features_2, temperature: float = 0.05, *,
                  return_neg: bool = True,
                  block_rows: int | None = None,
                  precision=jax.lax.Precision.HIGHEST):
    """JAX/Pallas equivalent of PairConLoss.forward.

    return_neg=False skips materializing the (2B, 2B-2) `neg` matrix (loss-only
    fast path); 'loss', 'pos_mean', 'neg_mean', 'pos' are still exact.
    """
    B, D = features_1.shape
    assert B >= 2, "PairConLoss needs batch_size >= 2"
    two_b = 2 * B
    neg_inner = two_b - 2
    neg_width = _round_up(neg_inner, 128) if return_neg else 0

    features = jnp.concatenate([features_1, features_2], axis=0).astype(jnp.float32)

    vmem_cap = _vmem_capacity_bytes()
    budget = int(0.70 * vmem_cap)

    if block_rows is not None:
        tm = int(block_rows)
        assert two_b % tm == 0, "block_rows must divide 2 * batch_size"
    else:
        tm = _pick_block_rows(two_b, D, return_neg, neg_width, budget)
    grid = (two_b // tm,)

    est = _vmem_estimate_bytes(two_b, D, tm, neg_width, return_neg, rhs_bufs=2)
    vmem_limit = int(min(vmem_cap, max(32 * 1024 * 1024, 2 * est)))

    kernel = functools.partial(
        _paircon_kernel, batch_size=B, block_rows=tm,
        temperature=float(temperature), neg_width=neg_width, precision=precision)

    def _build(single_buffer_rhs: bool):
        if single_buffer_rhs:
            # Constant index_map -> block never re-fetched; 1-deep buffering
            # halves the largest VMEM allocation.
            rhs_spec = pl.BlockSpec((two_b, D), lambda i: (0, 0),
                                    pipeline_mode=pl.Buffered(1))
        else:
            rhs_spec = pl.BlockSpec((two_b, D), lambda i: (0, 0))

        out_shape = [jax.ShapeDtypeStruct((two_b, 3), jnp.float32)]        # pos|Ng|loss
        out_specs = [pl.BlockSpec((tm, 3), lambda i: (i, 0))]
        if return_neg:
            out_shape.append(jax.ShapeDtypeStruct((two_b, neg_width), jnp.float32))
            out_specs.append(pl.BlockSpec((tm, neg_width), lambda i: (i, 0)))

        return pl.pallas_call(
            kernel,
            out_shape=tuple(out_shape),
            grid_spec=pltpu.PrefetchScalarGridSpec(
                num_scalar_prefetch=0,
                grid=grid,
                in_specs=[rhs_spec],
                out_specs=tuple(out_specs)),
            compiler_params=pltpu.CompilerParams(
                dimension_semantics=("parallel",),   # megacore shard on v7x
                vmem_limit_bytes=vmem_limit),
        )

    try:
        outs = _build(True)(features)
    except Exception:
        # Fallback for JAX builds without BlockSpec pipeline_mode / Buffered(1).
        outs = _build(False)(features)

    stats = outs[0]
    pos = stats[:, 0]
    ng = stats[:, 1]
    loss_rows = stats[:, 2]

    # Tiny O(2B) reductions in plain JAX; the row-tile grid stays accumulator-free.
    loss = jnp.mean(loss_rows)
    pos_mean = jnp.mean(pos)
    neg_mean = jnp.sum(ng) / jnp.float32(two_b * neg_inner)

    result = {'loss': loss, 'pos_mean': pos_mean, 'neg_mean': neg_mean, 'pos': pos}
    if return_neg:
        neg_padded = outs[1]
        result['neg'] = (neg_padded[:, :neg_inner]
                         if neg_width != neg_inner else neg_padded)
    return result


# ---------------------------------------------------------------------------
# Reference & self-test
# ---------------------------------------------------------------------------
def _reference_numpy(f1, f2, temperature=0.05):
    """float64 NumPy reference mirroring the PyTorch forward."""
    f1 = np.asarray(f1, dtype=np.float64)
    f2 = np.asarray(f2, dtype=np.float64)
    B = f1.shape[0]
    feats = np.concatenate([f1, f2], axis=0)
    pos = np.exp(np.sum(f1 * f2, axis=-1) / temperature)
    pos = np.concatenate([pos, pos], axis=0)
    neg_full = np.exp(feats @ feats.T / temperature)
    mask = ~np.tile(np.eye(B, dtype=bool), (2, 2))
    neg = neg_full[mask].reshape(2 * B, -1)
    ng = neg.sum(axis=-1)
    loss = np.mean(-np.log(pos / (ng + pos)))
    return loss, pos.mean(), neg.mean(), pos, neg


if __name__ == "__main__":
    key = jax.random.PRNGKey(0)
    B, D = 12, 32
    k1, k2 = jax.random.split(key)
    f1 = jax.random.normal(k1, (B, D), dtype=jnp.float32)
    f2 = jax.random.normal(k2, (B, D), dtype=jnp.float32)
    # SCCL feeds L2-normalized embeddings; normalize so exp(sim/0.05) stays finite.
    f1 = f1 / jnp.linalg.norm(f1, axis=-1, keepdims=True)
    f2 = f2 / jnp.linalg.norm(f2, axis=-1, keepdims=True)

    ref_loss, ref_pm, ref_nm, ref_pos, ref_neg = _reference_numpy(f1, f2, 0.05)

    configs = [
        # (kwargs, rtol)
        (dict(return_neg=True, block_rows=None), 1e-4),      # tm=8, grid=(3,), padded neg
        (dict(return_neg=True, block_rows=2 * B), 1e-4),     # single full-height block
        (dict(return_neg=False, block_rows=None), 1e-4),     # loss-only fast path
        (dict(return_neg=False, block_rows=None,
              precision=jax.lax.Precision.HIGH), 5e-4),      # bf16_3x MXU path
    ]

    for kwargs, rtol in configs:
        out = pair_con_loss(f1, f2, temperature=0.05, **kwargs)
        jax.block_until_ready(out['loss'])
        np.testing.assert_allclose(np.asarray(out['loss']), ref_loss,
                                   rtol=rtol, atol=1e-5)
        np.testing.assert_allclose(np.asarray(out['pos_mean']), ref_pm, rtol=rtol)
        np.testing.assert_allclose(np.asarray(out['neg_mean']), ref_nm, rtol=rtol)
        np.testing.assert_allclose(np.asarray(out['pos']), ref_pos, rtol=rtol)
        if kwargs.get('return_neg', True):
            np.testing.assert_allclose(np.asarray(out['neg']), ref_neg,
                                       rtol=rtol, atol=1e-12)

    print("KERNEL_OK")
</pallas_src>

<mosaic_0001>
module attributes {stable_mosaic.version = 11 : i64} {
  func.func @_paircon_kernel(%arg0: i32, %arg1: memref<24x32xf32, #tpu.memory_space<vmem>>, %arg2: memref<8x3xf32, #tpu.memory_space<vmem>>, %arg3: memref<8x128xf32, #tpu.memory_space<vmem>>) attributes {dimension_semantics = [#tpu.dimension_semantics<parallel>], iteration_bounds = array<i64: 3>, scalar_prefetch = 0 : i64, scratch_operands = 0 : i64, tpu.core_type = #tpu.core_type<tc>, window_params = [{pipeline_mode = #tpu.pipeline_mode<synchronous>, transform_indices = @transform_0, window_bounds = array<i64: 24, 32>}, {transform_indices = @transform_1, window_bounds = array<i64: 8, 3>}, {transform_indices = @transform_2, window_bounds = array<i64: 8, 128>}]} {
    %c8_i32 = arith.constant 8 : i32
    %0 = arith.muli %arg0, %c8_i32 : i32
    %1 = tpu.assume_multiple %0, 8 : i32
    %c0 = arith.constant 0 : index
    %c0_0 = arith.constant 0 : index
    %2 = vector.load %arg1[%c0, %c0_0] : memref<24x32xf32, #tpu.memory_space<vmem>>, vector<24x32xf32>
    %3 = arith.index_cast %1 : i32 to index
    %c0_1 = arith.constant 0 : index
    %4 = vector.load %arg1[%3, %c0_1] : memref<24x32xf32, #tpu.memory_space<vmem>>, vector<8x32xf32>
    %cst = arith.constant dense<0.000000e+00> : vector<8x24xf32>
    %5 = tpu.matmul %4, %2, %cst {dimension_numbers = #tpu.dot_dimension_numbers<[1], [1], [0], [0], [0, 0, 1, 0], [], []>, precision = #tpu.contract_precision<fp32>} : vector<8x32xf32>, vector<24x32xf32>, vector<8x24xf32> -> vector<8x24xf32>
    %cst_2 = arith.constant 2.000000e+01 : f32
    %6 = vector.broadcast %cst_2 : f32 to vector<8x24xf32>
    %7 = arith.mulf %5, %6 : vector<8x24xf32>
    %8 = math.exp %7 : vector<8x24xf32>
    %9 = tpu.iota {dimensions = array<i32: 0>} : vector<8x1xi32>
    %10 = vector.broadcast %1 : i32 to vector<8x1xi32>
    %11 = arith.addi %9, %10 : vector<8x1xi32>
    %c12_i32 = arith.constant 12 : i32
    %12 = vector.broadcast %c12_i32 : i32 to vector<8x1xi32>
    %13 = arith.cmpi slt, %11, %12 : vector<8x1xi32>
    %c12_i32_3 = arith.constant 12 : i32
    %14 = vector.broadcast %c12_i32_3 : i32 to vector<8x1xi32>
    %15 = arith.subi %11, %14 : vector<8x1xi32>
    %16 = arith.select %13, %11, %15 : vector<8x1xi1>, vector<8x1xi32>
    %c12_i32_4 = arith.constant 12 : i32
    %17 = vector.broadcast %c12_i32_4 : i32 to vector<8x1xi32>
    %18 = arith.addi %11, %17 : vector<8x1xi32>
    %c12_i32_5 = arith.constant 12 : i32
    %19 = vector.broadcast %c12_i32_5 : i32 to vector<8x1xi32>
    %20 = arith.subi %11, %19 : vector<8x1xi32>
    %21 = arith.select %13, %18, %20 : vector<8x1xi1>, vector<8x1xi32>
    %22 = tpu.iota {dimensions = array<i32: 1>} : vector<8x24xi32>
    %23 = vector.broadcast %21 : vector<8x1xi32> to vector<8x24xi32>
    %24 = arith.cmpi eq, %22, %23 : vector<8x24xi32>
    %cst_6 = arith.constant 0.000000e+00 : f32
    %25 = vector.broadcast %cst_6 : f32 to vector<8x24xf32>
    %26 = arith.select %24, %7, %25 : vector<8x24xi1>, vector<8x24xf32>
    %cst_7 = arith.constant dense<0.000000e+00> : vector<8xf32>
    %27 = vector.multi_reduction <add>, %26, %cst_7 [1] : vector<8x24xf32> to vector<8xf32>
    %28 = vector.shape_cast %27 : vector<8xf32> to vector<8x1xf32>
    %29 = math.exp %28 : vector<8x1xf32>
    %30 = vector.broadcast %16 : vector<8x1xi32> to vector<8x24xi32>
    %31 = arith.cmpi eq, %22, %30 : vector<8x24xi32>
    %c12_i32_8 = arith.constant 12 : i32
    %32 = vector.broadcast %c12_i32_8 : i32 to vector<8x1xi32>
    %33 = arith.addi %16, %32 : vector<8x1xi32>
    %34 = vector.broadcast %33 : vector<8x1xi32> to vector<8x24xi32>
    %35 = arith.cmpi eq, %22, %34 : vector<8x24xi32>
    %36 = arith.ori %31, %35 : vector<8x24xi1>
    %cst_9 = arith.constant 0.000000e+00 : f32
    %37 = vector.broadcast %cst_9 : f32 to vector<8x24xf32>
    %38 = arith.select %36, %37, %8 : vector<8x24xi1>, vector<8x24xf32>
    %cst_10 = arith.constant dense<0.000000e+00> : vector<8xf32>
    %39 = vector.multi_reduction <add>, %38, %cst_10 [1] : vector<8x24xf32> to vector<8xf32>
    %40 = vector.shape_cast %39 : vector<8xf32> to vector<8x1xf32>
    %41 = arith.addf %40, %29 : vector<8x1xf32>
    %42 = math.log %41 : vector<8x1xf32>
    %43 = arith.subf %42, %28 : vector<8x1xf32>
    %44 = tpu.iota {dimensions = array<i32: 1>} : vector<8x3xi32>
    %c0_i32 = arith.constant 0 : i32
    %45 = vector.broadcast %c0_i32 : i32 to vector<8x3xi32>
    %46 = arith.cmpi eq, %44, %45 : vector<8x3xi32>
    %c1_i32 = arith.constant 1 : i32
    %47 = vector.broadcast %c1_i32 : i32 to vector<8x3xi32>
    %48 = arith.cmpi eq, %44, %47 : vector<8x3xi32>
    %49 = vector.shape_cast %40 : vector<8x1xf32> to vector<8x1xf32>
    %50 = vector.broadcast %49 : vector<8x1xf32> to vector<8x3xf32>
    %51 = vector.shape_cast %43 : vector<8x1xf32> to vector<8x1xf32>
    %52 = vector.broadcast %51 : vector<8x1xf32> to vector<8x3xf32>
    %53 = arith.select %48, %50, %52 : vector<8x3xi1>, vector<8x3xf32>
    %54 = vector.shape_cast %29 : vector<8x1xf32> to vector<8x1xf32>
    %55 = vector.broadcast %54 : vector<8x1xf32> to vector<8x3xf32>
    %56 = arith.select %46, %55, %53 : vector<8x3xi1>, vector<8x3xf32>
    %c0_11 = arith.constant 0 : index
    %c0_12 = arith.constant 0 : index
    %57 = vector.load %arg2[%c0_11, %c0_12] : memref<8x3xf32, #tpu.memory_space<vmem>>, vector<8x3xf32>
    tpu.vector_store %arg2[%c0_11, %c0_12], %56 {strides = array<i32>} : memref<8x3xf32, #tpu.memory_space<vmem>>, vector<8x3xf32>,
    %58 = tpu.iota {dimensions = array<i32: 1>} : vector<8x22xi32>
    %59 = vector.extract_strided_slice %8 {offsets = [0, 0], sizes = [8, 22], strides = [1, 1]} : vector<8x24xf32> to vector<8x22xf32>
    %60 = vector.extract_strided_slice %8 {offsets = [0, 1], sizes = [8, 22], strides = [1, 1]} : vector<8x24xf32> to vector<8x22xf32>
    %61 = vector.extract_strided_slice %8 {offsets = [0, 2], sizes = [8, 22], strides = [1, 1]} : vector<8x24xf32> to vector<8x22xf32>
    %62 = vector.broadcast %16 : vector<8x1xi32> to vector<8x22xi32>
    %63 = arith.cmpi slt, %58, %62 : vector<8x22xi32>
    %c11_i32 = arith.constant 11 : i32
    %64 = vector.broadcast %c11_i32 : i32 to vector<8x1xi32>
    %65 = arith.addi %16, %64 : vector<8x1xi32>
    %66 = vector.broadcast %65 : vector<8x1xi32> to vector<8x22xi32>
    %67 = arith.cmpi slt, %58, %66 : vector<8x22xi32>
    %68 = arith.select %67, %60, %61 : vector<8x22xi1>, vector<8x22xf32>
    %69 = arith.select %63, %59, %68 : vector<8x22xi1>, vector<8x22xf32>
    %cst_13 = arith.constant 0.000000e+00 : f32
    %70 = vector.broadcast %cst_13 : f32 to vector<8x128xf32>
    %c0_14 = arith.constant 0 : index
    %c0_15 = arith.constant 0 : index
    %71 = vector.load %arg3[%c0_14, %c0_15] : memref<8x128xf32, #tpu.memory_space<vmem>>, vector<8x128xf32>
    tpu.vector_store %arg3[%c0_14, %c0_15], %70 {strides = array<i32>} : memref<8x128xf32, #tpu.memory_space<vmem>>, vector<8x128xf32>,
    %c0_16 = arith.constant 0 : index
    %c0_17 = arith.constant 0 : index
    %72 = vector.load %arg3[%c0_16, %c0_17] : memref<8x128xf32, #tpu.memory_space<vmem>>, vector<8x22xf32>
    tpu.vector_store %arg3[%c0_16, %c0_17], %69 {strides = array<i32>} : memref<8x128xf32, #tpu.memory_space<vmem>>, vector<8x22xf32>,
    return
  }
  func.func @transform_0(%arg0: i32) -> (i32, i32) {
    %c0_i32 = arith.constant 0 : i32
    %c0_i32_0 = arith.constant 0 : i32
    %c0_i32_1 = arith.constant 0 : i32
    return %c0_i32, %c0_i32_0 : i32, i32
  }
  func.func @transform_1(%arg0: i32) -> (i32, i32) {
    %c0_i32 = arith.constant 0 : i32
    %c0_i32_0 = arith.constant 0 : i32
    return %arg0, %c0_i32 : i32, i32
  }
  func.func @transform_2(%arg0: i32) -> (i32, i32) {
    %c0_i32 = arith.constant 0 : i32
    %c0_i32_0 = arith.constant 0 : i32
    return %arg0, %c0_i32 : i32, i32
  }
}

module attributes {stable_mosaic.version = 11 : i64} {
  func.func @_paircon_kernel(%arg0: i32, %arg1: memref<24x32xf32, #tpu.memory_space<vmem>>, %arg2: memref<8x3xf32, #tpu.memory_space<vmem>>, %arg3: memref<8x128xf32, #tpu.memory_space<vmem>>) attributes {dimension_semantics = [#tpu.dimension_semantics<parallel>], iteration_bounds = array<i64: 3>, scalar_prefetch = 0 : i64, scratch_operands = 0 : i64, tpu.core_type = #tpu.core_type<tc>, window_params = [{pipeline_mode = #tpu.pipeline_mode<synchronous>, transform_indices = @transform_0, window_bounds = array<i64: 24, 32>}, {transform_indices = @transform_1, window_bounds = array<i64: 8, 3>}, {transform_indices = @transform_2, window_bounds = array<i64: 8, 128>}]} {
    %c8_i32 = arith.constant 8 : i32
    %0 = arith.muli %arg0, %c8_i32 : i32
    %1 = tpu.assume_multiple %0, 8 : i32
    %c0 = arith.constant 0 : index
    %c0_0 = arith.constant 0 : index
    %2 = vector.load %arg1[%c0, %c0_0] : memref<24x32xf32, #tpu.memory_space<vmem>>, vector<24x32xf32>
    %3 = arith.index_cast %1 : i32 to index
    %c0_1 = arith.constant 0 : index
    %4 = vector.load %arg1[%3, %c0_1] : memref<24x32xf32, #tpu.memory_space<vmem>>, vector<8x32xf32>
    %cst = arith.constant dense<0.000000e+00> : vector<8x24xf32>
    %5 = tpu.matmul %4, %2, %cst {dimension_numbers = #tpu.dot_dimension_numbers<[1], [1], [0], [0], [0, 0, 1, 0], [], []>, precision = #tpu.contract_precision<fp32>} : vector<8x32xf32>, vector<24x32xf32>, vector<8x24xf32> -> vector<8x24xf32>
    %cst_2 = arith.constant 2.000000e+01 : f32
    %6 = vector.broadcast %cst_2 : f32 to vector<8x24xf32>
    %7 = arith.mulf %5, %6 : vector<8x24xf32>
    %8 = math.exp %7 : vector<8x24xf32>
    %9 = tpu.iota {dimensions = array<i32: 0>} : vector<8x1xi32>
    %10 = vector.broadcast %1 : i32 to vector<8x1xi32>
    %11 = arith.addi %9, %10 : vector<8x1xi32>
    %c12_i32 = arith.constant 12 : i32
    %12 = vector.broadcast %c12_i32 : i32 to vector<8x1xi32>
    %13 = arith.cmpi slt, %11, %12 : vector<8x1xi32>
    %c12_i32_3 = arith.constant 12 : i32
    %14 = vector.broadcast %c12_i32_3 : i32 to vector<8x1xi32>
    %15 = arith.subi %11, %14 : vector<8x1xi32>
    %16 = arith.select %13, %11, %15 : vector<8x1xi1>, vector<8x1xi32>
    %c12_i32_4 = arith.constant 12 : i32
    %17 = vector.broadcast %c12_i32_4 : i32 to vector<8x1xi32>
    %18 = arith.addi %11, %17 : vector<8x1xi32>
    %c12_i32_5 = arith.constant 12 : i32
    %19 = vector.broadcast %c12_i32_5 : i32 to vector<8x1xi32>
    %20 = arith.subi %11, %19 : vector<8x1xi32>
    %21 = arith.select %13, %18, %20 : vector<8x1xi1>, vector<8x1xi32>
    %22 = tpu.iota {dimensions = array<i32: 1>} : vector<8x24xi32>
    %23 = vector.broadcast %21 : vector<8x1xi32> to vector<8x24xi32>
    %24 = arith.cmpi eq, %22, %23 : vector<8x24xi32>
    %cst_6 = arith.constant 0.000000e+00 : f32
    %25 = vector.broadcast %cst_6 : f32 to vector<8x24xf32>
    %26 = arith.select %24, %7, %25 : vector<8x24xi1>, vector<8x24xf32>
    %cst_7 = arith.constant dense<0.000000e+00> : vector<8xf32>
    %27 = vector.multi_reduction <add>, %26, %cst_7 [1] : vector<8x24xf32> to vector<8xf32>
    %28 = vector.shape_cast %27 : vector<8xf32> to vector<8x1xf32>
    %29 = math.exp %28 : vector<8x1xf32>
    %30 = vector.broadcast %16 : vector<8x1xi32> to vector<8x24xi32>
    %31 = arith.cmpi eq, %22, %30 : vector<8x24xi32>
    %c12_i32_8 = arith.constant 12 : i32
    %32 = vector.broadcast %c12_i32_8 : i32 to vector<8x1xi32>
    %33 = arith.addi %16, %32 : vector<8x1xi32>
    %34 = vector.broadcast %33 : vector<8x1xi32> to vector<8x24xi32>
    %35 = arith.cmpi eq, %22, %34 : vector<8x24xi32>
    %36 = arith.ori %31, %35 : vector<8x24xi1>
    %cst_9 = arith.constant 0.000000e+00 : f32
    %37 = vector.broadcast %cst_9 : f32 to vector<8x24xf32>
    %38 = arith.select %36, %37, %8 : vector<8x24xi1>, vector<8x24xf32>
    %cst_10 = arith.constant dense<0.000000e+00> : vector<8xf32>
    %39 = vector.multi_reduction <add>, %38, %cst_10 [1] : vector<8x24xf32> to vector<8xf32>
    %40 = vector.shape_cast %39 : vector<8xf32> to vector<8x1xf32>
    %41 = arith.addf %40, %29 : vector<8x1xf32>
    %42 = math.log %41 : vector<8x1xf32>
    %43 = arith.subf %42, %28 : vector<8x1xf32>
    %44 = tpu.iota {dimensions = array<i32: 1>} : vector<8x3xi32>
    %c0_i32 = arith.constant 0 : i32
    %45 = vector.broadcast %c0_i32 : i32 to vector<8x3xi32>
    %46 = arith.cmpi eq, %44, %45 : vector<8x3xi32>
    %c1_i32 = arith.constant 1 : i32
    %47 = vector.broadcast %c1_i32 : i32 to vector<8x3xi32>
    %48 = arith.cmpi eq, %44, %47 : vector<8x3xi32>
    %49 = vector.shape_cast %40 : vector<8x1xf32> to vector<8x1xf32>
    %50 = vector.broadcast %49 : vector<8x1xf32> to vector<8x3xf32>
    %51 = vector.shape_cast %43 : vector<8x1xf32> to vector<8x1xf32>
    %52 = vector.broadcast %51 : vector<8x1xf32> to vector<8x3xf32>
    %53 = arith.select %48, %50, %52 : vector<8x3xi1>, vector<8x3xf32>
    %54 = vector.shape_cast %29 : vector<8x1xf32> to vector<8x1xf32>
    %55 = vector.broadcast %54 : vector<8x1xf32> to vector<8x3xf32>
    %56 = arith.select %46, %55, %53 : vector<8x3xi1>, vector<8x3xf32>
    %c0_11 = arith.constant 0 : index
    %c0_12 = arith.constant 0 : index
    %57 = vector.load %arg2[%c0_11, %c0_12] : memref<8x3xf32, #tpu.memory_space<vmem>>, vector<8x3xf32>
    tpu.vector_store %arg2[%c0_11, %c0_12], %56 {strides = array<i32>} : memref<8x3xf32, #tpu.memory_space<vmem>>, vector<8x3xf32>,
    %58 = tpu.iota {dimensions = array<i32: 1>} : vector<8x22xi32>
    %59 = vector.extract_strided_slice %8 {offsets = [0, 0], sizes = [8, 22], strides = [1, 1]} : vector<8x24xf32> to vector<8x22xf32>
    %60 = vector.extract_strided_slice %8 {offsets = [0, 1], sizes = [8, 22], strides = [1, 1]} : vector<8x24xf32> to vector<8x22xf32>
    %61 = vector.extract_strided_slice %8 {offsets = [0, 2], sizes = [8, 22], strides = [1, 1]} : vector<8x24xf32> to vector<8x22xf32>
    %62 = vector.broadcast %16 : vector<8x1xi32> to vector<8x22xi32>
    %63 = arith.cmpi slt, %58, %62 : vector<8x22xi32>
    %c11_i32 = arith.constant 11 : i32
    %64 = vector.broadcast %c11_i32 : i32 to vector<8x1xi32>
    %65 = arith.addi %16, %64 : vector<8x1xi32>
    %66 = vector.broadcast %65 : vector<8x1xi32> to vector<8x22xi32>
    %67 = arith.cmpi slt, %58, %66 : vector<8x22xi32>
    %68 = arith.select %67, %60, %61 : vector<8x22xi1>, vector<8x22xf32>
    %69 = arith.select %63, %59, %68 : vector<8x22xi1>, vector<8x22xf32>
    %cst_13 = arith.constant 0.000000e+00 : f32
    %70 = vector.broadcast %cst_13 : f32 to vector<8x128xf32>
    %c0_14 = arith.constant 0 : index
    %c0_15 = arith.constant 0 : index
    %71 = vector.load %arg3[%c0_14, %c0_15] : memref<8x128xf32, #tpu.memory_space<vmem>>, vector<8x128xf32>
    tpu.vector_store %arg3[%c0_14, %c0_15], %70 {strides = array<i32>} : memref<8x128xf32, #tpu.memory_space<vmem>>, vector<8x128xf32>,
    %c0_16 = arith.constant 0 : index
    %c0_17 = arith.constant 0 : index
    %72 = vector.load %arg3[%c0_16, %c0_17] : memref<8x128xf32, #tpu.memory_space<vmem>>, vector<8x22xf32>
    tpu.vector_store %arg3[%c0_16, %c0_17], %69 {strides = array<i32>} : memref<8x128xf32, #tpu.memory_space<vmem>>, vector<8x22xf32>,
    return
  }
  func.func @transform_0(%arg0: i32) -> (i32, i32) {
    %c0_i32 = arith.constant 0 : i32
    %c0_i32_0 = arith.constant 0 : i32
    %c0_i32_1 = arith.constant 0 : i32
    return %c0_i32, %c0_i32_0 : i32, i32
  }
  func.func @transform_1(%arg0: i32) -> (i32, i32) {
    %c0_i32 = arith.constant 0 : i32
    %c0_i32_0 = arith.constant 0 : i32
    return %arg0, %c0_i32 : i32, i32
  }
  func.func @transform_2(%arg0: i32) -> (i32, i32) {
    %c0_i32 = arith.constant 0 : i32
    %c0_i32_0 = arith.constant 0 : i32
    return %arg0, %c0_i32 : i32, i32
  }
}

</mosaic_0001>

<llo_original>
// kernel: tpu_custom_call.1
$region0: #{tpu_custom_call.1}
  #allocation0 [shape = 'u32[]', space=smem, size = 0x4, offset = 0x4, fixed_abs, tag = 'smem constant byte address 0x4 - core index']
  #allocation1 [shape = 'u32[144,128]{1,0:T(1,128)}', space=vmem, size = 0x12000, scoped, tag = 'internal scratch']
  %s0 = inlined_call_operand.hbm [shape: f32[24,32], index: 0, kind: input, shape index: {}]
  %s1 = inlined_call_operand.vmem [shape: f32[24,3], index: 1, kind: output, shape index: {0}]
  %s2 = inlined_call_operand.hbm [shape: f32[24,128], index: 2, kind: output, shape index: {1}]
  %3 = xla_tuple %s1, %s2
  %s4 = sld [smem:[#allocation0]]
  $region49: #{tpu_custom_call.1} parent=0
    _
  %s6 = ssub.s32 1, %s4
  %s7 = scalar_select 0, %s6, %s4
  $region1: #{tpu_custom_call.1} parent=0
    #allocation2 [shape = 'u8[12288]{0}', space=vmem, size = 0x3000, scoped, tag = 'input window, operand 0, single buffered']
    #allocation3 [shape = 's32[2]{0}', space=sflag, size = 0x8, scoped, tag = 'scoped memory for tpu_custom_call.1']
    #allocation4 [shape = 's32[2]{0}', space=sflag, size = 0x8, scoped, tag = 'scoped memory for tpu_custom_call.1']
    #allocation5 [shape = 'u8[8192]{0}', space=vmem, size = 0x2000, scoped, tag = 'output window, operand 1']
    %8 = vsyncpa [#allocation3], 0
    %9 = vsyncpa [#allocation4], 0
    %s10 = scalar_lea.sflag [#allocation4], 1
    %11 = vsyncpa %s10, 0
    loop: start=0, step=1, limit=5
    $region2: #{tpu_custom_call.1} parent=1 // loop_pre_header
      _
    $region3: #{tpu_custom_call.1} parent=1 // loop_header
      %s13 = sphi 0, %s17
      %p14 = scmp.ge.s32.totalorder %s13, 5
      %s21 = sphi 0, %s21
      %s23 = sphi 0, %s21
      %s24 = sphi 0, %s23
      %s38 = sphi 0, %s24
      %s44 = sphi 0, %s46
      %s47 = sphi 0, %s44
      %s48 = sphi 0, %s47
      %s64 = sphi 0, %s48
      %s70 = sphi 0, %s72
      %s73 = sphi 0, %s70
      %s74 = sphi 0, %s73
      %s90 = sphi 0, %s74
    $region4: #{tpu_custom_call.1} parent=1 // loop_header_branch
      %16 = sbr.rel (%p14) target = $region8
    $region5: #{tpu_custom_call.1} parent=1 // loop_body
      %s18 = ssub.s32 %s13, 1
      %s19 = ssub.s32 %s13, 2
      %s20 = sadd.s32 %s13, 1
      %s22 = sadd.s32 %s21, 1
      %p25 = scmp.eq.s32.totalorder %s13, 2
      %p26 = scmp.ne.s32.totalorder %s21, %s23
      %p27 = scmp.eq.s32.totalorder %s13, 0
      %p28 = por %p26, %p27
      %p29 = scmp.ne.s32.totalorder %s21, %s23
      %p30 = scmp.eq.s32.totalorder %s18, 2
      %p31 = por %p29, %p30
      %p32 = scmp.ne.s32.totalorder %s23, %s24
      %p33 = scmp.eq.s32.totalorder %s18, 0
      %p34 = por %p32, %p33
      %p35 = scmp.ne.s32.totalorder %s23, %s24
      %p36 = scmp.eq.s32.totalorder %s19, 2
      %p37 = por %p35, %p36
      %p39 = scmp.ne.s32.totalorder %s24, %s38
      %p40 = scmp.eq.s32.totalorder %s19, 0
      %p41 = por %p39, %p40
      %s42 = ssub.s32 %s13, %s20
      %p43 = scmp.eq.s32.totalorder %s42, 0
      %s45 = sadd.s32 %s44, 1
      %s46 = scalar_select %p43, %s44, %s45
      %p49 = pneg %p43
      %p50 = scmp.eq.s32.totalorder %s13, 2
      %p51 = por %p49, %p50
      %p52 = scmp.ne.s32.totalorder %s44, %s47
      %p53 = scmp.eq.s32.totalorder %s13, 0
      %p54 = por %p52, %p53
      %p55 = scmp.ne.s32.totalorder %s44, %s47
      %p56 = scmp.eq.s32.totalorder %s18, 2
      %p57 = por %p55, %p56
      %p58 = scmp.ne.s32.totalorder %s47, %s48
      %p59 = scmp.eq.s32.totalorder %s18, 0
      %p60 = por %p58, %p59
      %p61 = scmp.ne.s32.totalorder %s47, %s48
      %p62 = scmp.eq.s32.totalorder %s19, 2
      %p63 = por %p61, %p62
      %p65 = scmp.ne.s32.totalorder %s48, %s64
      %p66 = scmp.eq.s32.totalorder %s19, 0
      %p67 = por %p65, %p66
      %s68 = ssub.s32 %s13, %s20
      %p69 = scmp.eq.s32.totalorder %s68, 0
      %s71 = sadd.s32 %s70, 1
      %s72 = scalar_select %p69, %s70, %s71
      %p75 = pneg %p69
      %p76 = scmp.eq.s32.totalorder %s13, 2
      %p77 = por %p75, %p76
      %p78 = scmp.ne.s32.totalorder %s70, %s73
      %p79 = scmp.eq.s32.totalorder %s13, 0
      %p80 = por %p78, %p79
      %p81 = scmp.ne.s32.totalorder %s70, %s73
      %p82 = scmp.eq.s32.totalorder %s18, 2
      %p83 = por %p81, %p82
      %p84 = scmp.ne.s32.totalorder %s73, %s74
      %p85 = scmp.eq.s32.totalorder %s18, 0
      %p86 = por %p84, %p85
      %p87 = scmp.ne.s32.totalorder %s73, %s74
      %p88 = scmp.eq.s32.totalorder %s19, 2
      %p89 = por %p87, %p88
      %p91 = scmp.ne.s32.totalorder %s74, %s90
      %p92 = scmp.eq.s32.totalorder %s19, 0
      %p93 = por %p91, %p92
      %p94 = scmp.le.s32.totalorder 1, %s13
      %p95 = scmp.lt.s32.totalorder %s13, 4
      %p96 = pnand %p94, %p95
      %p97 = pneg %p96
      // Predicated region
      $region9: #{tpu_custom_call.1} parent=5 // pred_check
        _
      $region10: #{tpu_custom_call.1} parent=5 // pred_check_branch
        %99 = sbr.rel (%p96) target = $region12
      $region11: #{tpu_custom_call.1} parent=5 // pred_region
        %s100 = ssub.s32 %s13, 1
        // Predicated region
        $region13: #{tpu_custom_call.1} parent=11 // pred_check
          %p101 = pneg %p34
        $region14: #{tpu_custom_call.1} parent=11 // pred_check_branch
          %103 = sbr.rel (%p101) target = $region16
        $region15: #{tpu_custom_call.1} parent=11 // pred_region
          %s105 = ssub.s32 384, 384
          %106 = vsyncadd [#allocation3], %s105
          %s107 = sshll.u32 [#allocation2], 4
          %s108 = int_to_ptr.vmem [resolvable:$true] %s107
          %113 = dma.hbm_to_vmem [thread:$0]  %s0, 384, %s108, [#allocation3], 128, 128, 8
        $region16: #{tpu_custom_call.1} parent=11 // pred_fallthru
          _
      $region12: #{tpu_custom_call.1} parent=5 // pred_fallthru
        _
      %p114 = scmp.lt.s32.totalorder %s13, 3
      // Predicated region
      $region17: #{tpu_custom_call.1} parent=5 // pred_check
        %p115 = pneg %p114
      $region18: #{tpu_custom_call.1} parent=5 // pred_check_branch
        %117 = sbr.rel (%p115) target = $region20
      $region19: #{tpu_custom_call.1} parent=5 // pred_region
        _
      $region20: #{tpu_custom_call.1} parent=5 // pred_fallthru
        _
      %p118 = scmp.le.s32.totalorder 1, %s13
      %p119 = scmp.lt.s32.totalorder %s13, 4
      %p120 = pnand %p118, %p119
      %p121 = pneg %p120
      // Predicated region
      $region21: #{tpu_custom_call.1} parent=5 // pred_check
        _
      $region22: #{tpu_custom_call.1} parent=5 // pred_check_branch
        %123 = sbr.rel (%p120) target = $region24
      $region23: #{tpu_custom_call.1} parent=5 // pred_region
        %s124 = ssub.s32 %s13, 1
        // Predicated region
        $region25: #{tpu_custom_call.1} parent=23 // pred_check
          %p125 = pneg %p34
        $region26: #{tpu_custom_call.1} parent=23 // pred_check_branch
          %127 = sbr.rel (%p125) target = $region28
        $region27: #{tpu_custom_call.1} parent=23 // pred_region
          %128 = dma.done [#allocation3], 384
        $region28: #{tpu_custom_call.1} parent=23 // pred_fallthru
          _
        %p129 = pneg %p34
        %p130 = pneg %p31
        %p131 = pneg %p60
        %p132 = pneg %p57
        %p133 = scmp.lt.s32.totalorder %s18, 2
        %s134 = scalar_select %p133, %s18, 2
        %s135 = smul.addr %s134, 8
        %s136 = scalar_lea.vmem %s1, %s135
        %p137 = pneg %p86
        %p138 = pneg %p83
        %s139 = sand.u32 %s73, 1
        %s140 = scalar_lea.sflag [#allocation4], %s139
        %s141 = sand.u32 %s73, 1
        %s142 = smul.addr %s141, 8
        %s143 = scalar_lea.vmem [#allocation5], %s142
        %p144 = scmp.lt.s32.totalorder %s18, 2
        %s145 = scalar_select %p144, %s18, 2
        %s146 = smul.addr %s145, 8
        %s147 = scalar_lea.vmem %s1, %s146
        %s148 = smul.u32 %s18, 8
        %v149 = vld [vmem:[#allocation2] sm:$0xff]
        %v150 = vld [vmem:[#allocation2 + $0x8] sm:$0xff]
        %v151 = vld [vmem:[#allocation2 + $0x10] sm:$0xff]
        %s152 = scalar_lea.vmem [#allocation2], %s148
        %v153 = vld [vmem:[%s152] sm:$0xff]
        %vm154 = vcmask 261120
        %v156 = vsel %vm154, %v153, 0
        %v159 = vsel %vm154, %v149, 0
        %v162 = vsel %vm154, %v150, 0
        %v165 = vsel %vm154, %v151, 0
        %167 = vmatprep.subr.mxu0 0.0
        %v168 = vand.u32 %v159, 4294901760
        %169 = vmatpush1.xpose.msra.mxu0 %v168
        %170 = vmatprep.subr.mxu0 0.0
        %v171 = vand.u32 %v162, 4294901760
        %172 = vmatpush1.xpose.msra.mxu0 %v171
        %173 = vmatprep.subr.mxu0 0.0
        %v174 = vand.u32 %v165, 4294901760
        %175 = vmatpush1.xpose.msra.mxu0 %v174
        %176 = vmatprep.subr.mxu0 0.0
        %177 = vmatpush1.xpose.msra.mxu0 0.0
        %178 = vmatprep.subr.mxu0 0.0
        %179 = vmatpush1.xpose.msra.mxu0 0.0
        %180 = vmatprep.subr.mxu0 0.0
        %181 = vmatpush1.xpose.msra.mxu0 0.0
        %182 = vmatprep.subr.mxu0 0.0
        %183 = vmatpush1.xpose.msra.mxu0 0.0
        %184 = vmatprep.subr.mxu0 0.0
        %185 = vmatpush1.xpose.msra.mxu0 0.0
        %186 = vmatprep.subr.mxu0 0.0
        %187 = vmatpush1.xpose.msra.mxu0 0.0
        %188 = vmatprep.subr.mxu0 0.0
        %189 = vmatpush1.xpose.msra.mxu0 0.0
        %190 = vmatprep.subr.mxu0 0.0
        %191 = vmatpush1.xpose.msra.mxu0 0.0
        %192 = vmatprep.subr.mxu0 0.0
        %193 = vmatpush1.xpose.msra.mxu0 0.0
        %194 = vmatprep.subr.mxu0 0.0
        %195 = vmatpush1.xpose.msra.mxu0 0.0
        %196 = vmatprep.subr.mxu0 0.0
        %197 = vmatpush1.xpose.msra.mxu0 0.0
        %198 = vmatprep.subr.mxu0 0.0
        %199 = vmatpush1.xpose.msra.mxu0 0.0
        %200 = vmatprep.subr.mxu0 0.0
        %201 = vmatpush1.xpose.msra.mxu0 0.0
        %202 = vmatprep.subr.mxu0 0.0
        %203 = vmatpush1.xpose.msra.mxu0 0.0
        %204 = vmatprep.subr.mxu0 0.0
        %205 = vmatpush1.xpose.msra.mxu0 0.0
        %206 = vmatprep.subr.mxu0 0.0
        %207 = vmatpush1.xpose.msra.mxu0 0.0
        %208 = vmatprep.subr.mxu0 0.0
        %209 = vmatpush1.xpose.msra.mxu0 0.0
        %210 = vmatprep.subr.mxu0 0.0
        %211 = vmatpush1.xpose.msra.mxu0 0.0
        %212 = vmatprep.subr.mxu0 0.0
        %213 = vmatpush1.xpose.msra.mxu0 0.0
        %214 = vmatprep.subr.mxu0 0.0
        %215 = vmatpush1.xpose.msra.mxu0 0.0
        %216 = vmatprep.subr.mxu0 0.0
        %217 = vmatpush1.xpose.msra.mxu0 0.0
        %218 = vmatprep.subr.mxu0 0.0
        %219 = vmatpush1.xpose.msra.mxu0 0.0
        %220 = vmatprep.subr.mxu0 0.0
        %221 = vmatpush1.xpose.msra.mxu0 0.0
        %222 = vmatprep.subr.mxu0 0.0
        %223 = vmatpush1.xpose.msra.mxu0 0.0
        %224 = vmatprep.subr.mxu0 0.0
        %225 = vmatpush1.xpose.msra.mxu0 0.0
        %226 = vmatprep.subr.mxu0 0.0
        %227 = vmatpush1.xpose.msra.mxu0 0.0
        %228 = vmatprep.subr.mxu0 0.0
        %229 = vmatpush1.xpose.msra.mxu0 0.0
        %230 = vmatprep.subr.mxu0 0.0
        %231 = vmatpush1.xpose.msra.mxu0 0.0
        %232 = vmatprep.subr.mxu0 0.0
        %233 = vmatpush1.xpose.msra.mxu0 0.0
        %234 = vmatprep.mubr.f32.mxu0 0.0
        %v235 = vand.u32 %v156, 4294901760
        %v236 = vsub.f32 %v156, %v235
        %v237 = vand.u32 %v236, 4294901760
        %v238 = vsub.f32 %v236, %v237
        %v239 = vand.u32 %v238, 4294901760
        %240 = vmatmul.mubr.f32.gmra.mrb[0].mxu0 %v239
        %v241 = vpop.f32.mrb[0].mxu0
        %v242 = vadd.f32 0.0, %v241
        %v243 = vpop.f32.mrb[0].mxu0
        %244 = vdwg.mxu0
        %245 = vmatprep.subr.mxu0 0.0
        %v246 = vand.u32 %v159, 4294901760
        %v247 = vsub.f32 %v159, %v246
        %v248 = vand.u32 %v247, 4294901760
        %v249 = vsub.f32 %v247, %v248
        %v250 = vand.u32 %v249, 4294901760
        %251 = vmatpush1.xpose.msra.mxu0 %v250
        %252 = vmatprep.subr.mxu0 0.0
        %v253 = vand.u32 %v162, 4294901760
        %v254 = vsub.f32 %v162, %v253
        %v255 = vand.u32 %v254, 4294901760
        %v256 = vsub.f32 %v254, %v255
        %v257 = vand.u32 %v256, 4294901760
        %258 = vmatpush1.xpose.msra.mxu0 %v257
        %259 = vmatprep.subr.mxu0 0.0
        %v260 = vand.u32 %v165, 4294901760
        %v261 = vsub.f32 %v165, %v260
        %v262 = vand.u32 %v261, 4294901760
        %v263 = vsub.f32 %v261, %v262
        %v264 = vand.u32 %v263, 4294901760
        %265 = vmatpush1.xpose.msra.mxu0 %v264
        %266 = vmatprep.subr.mxu0 0.0
        %267 = vmatpush1.xpose.msra.mxu0 0.0
        %268 = vmatprep.subr.mxu0 0.0
        %269 = vmatpush1.xpose.msra.mxu0 0.0
        %270 = vmatprep.subr.mxu0 0.0
        %271 = vmatpush1.xpose.msra.mxu0 0.0
        %272 = vmatprep.subr.mxu0 0.0
        %273 = vmatpush1.xpose.msra.mxu0 0.0
        %274 = vmatprep.subr.mxu0 0.0
        %275 = vmatpush1.xpose.msra.mxu0 0.0
        %276 = vmatprep.subr.mxu0 0.0
        %277 = vmatpush1.xpose.msra.mxu0 0.0
        %278 = vmatprep.subr.mxu0 0.0
        %279 = vmatpush1.xpose.msra.mxu0 0.0
        %280 = vmatprep.subr.mxu0 0.0
        %281 = vmatpush1.xpose.msra.mxu0 0.0
        %282 = vmatprep.subr.mxu0 0.0
        %283 = vmatpush1.xpose.msra.mxu0 0.0
        %284 = vmatprep.subr.mxu0 0.0
        %285 = vmatpush1.xpose.msra.mxu0 0.0
        %286 = vmatprep.subr.mxu0 0.0
        %287 = vmatpush1.xpose.msra.mxu0 0.0
        %288 = vmatprep.subr.mxu0 0.0
        %289 = vmatpush1.xpose.msra.mxu0 0.0
        %290 = vmatprep.subr.mxu0 0.0
        %291 = vmatpush1.xpose.msra.mxu0 0.0
        %292 = vmatprep.subr.mxu0 0.0
        %293 = vmatpush1.xpose.msra.mxu0 0.0
        %294 = vmatprep.subr.mxu0 0.0
        %295 = vmatpush1.xpose.msra.mxu0 0.0
        %296 = vmatprep.subr.mxu0 0.0
        %297 = vmatpush1.xpose.msra.mxu0 0.0
        %298 = vmatprep.subr.mxu0 0.0
        %299 = vmatpush1.xpose.msra.mxu0 0.0
        %300 = vmatprep.subr.mxu0 0.0
        %301 = vmatpush1.xpose.msra.mxu0 0.0
        %302 = vmatprep.subr.mxu0 0.0
        %303 = vmatpush1.xpose.msra.mxu0 0.0
        %304 = vmatprep.subr.mxu0 0.0
        %305 = vmatpush1.xpose.msra.mxu0 0.0
        %306 = vmatprep.subr.mxu0 0.0
        %307 = vmatpush1.xpose.msra.mxu0 0.0
        %308 = vmatprep.subr.mxu0 0.0
        %309 = vmatpush1.xpose.msra.mxu0 0.0
        %310 = vmatprep.subr.mxu0 0.0
        %311 = vmatpush1.xpose.msra.mxu0 0.0
        %312 = vmatprep.subr.mxu0 0.0
        %313 = vmatpush1.xpose.msra.mxu0 0.0
        %314 = vmatprep.subr.mxu0 0.0
        %315 = vmatpush1.xpose.msra.mxu0 0.0
        %316 = vmatprep.subr.mxu0 0.0
        %317 = vmatpush1.xpose.msra.mxu0 0.0
        %318 = vmatprep.subr.mxu0 0.0
        %319 = vmatpush1.xpose.msra.mxu0 0.0
        %320 = vmatprep.subr.mxu0 0.0
        %321 = vmatpush1.xpose.msra.mxu0 0.0
        %322 = vmatprep.subr.mxu0 0.0
        %323 = vmatpush1.xpose.msra.mxu0 0.0
        %324 = vmatprep.mubr.f32.mxu0 0.0
        %v325 = vand.u32 %v156, 4294901760
        %326 = vmatmul.mubr.f32.gmra.mrb[0].mxu0 %v325
        %v327 = vpop.f32.mrb[0].mxu0
        %v328 = vadd.f32 %v242, %v327
        %v329 = vpop.f32.mrb[0].mxu0
        %330 = vdwg.mxu0
        %331 = vmatprep.subr.mxu0 0.0
        %v332 = vand.u32 %v159, 4294901760
        %v333 = vsub.f32 %v159, %v332
        %334 = vmatpush1.xpose.msra.mxu0 %v333
        %335 = vmatprep.subr.mxu0 0.0
        %v336 = vand.u32 %v162, 4294901760
        %v337 = vsub.f32 %v162, %v336
        %338 = vmatpush1.xpose.msra.mxu0 %v337
        %339 = vmatprep.subr.mxu0 0.0
        %v340 = vand.u32 %v165, 4294901760
        %v341 = vsub.f32 %v165, %v340
        %342 = vmatpush1.xpose.msra.mxu0 %v341
        %343 = vmatprep.subr.mxu0 0.0
        %344 = vmatpush1.xpose.msra.mxu0 0.0
        %345 = vmatprep.subr.mxu0 0.0
        %346 = vmatpush1.xpose.msra.mxu0 0.0
        %347 = vmatprep.subr.mxu0 0.0
        %348 = vmatpush1.xpose.msra.mxu0 0.0
        %349 = vmatprep.subr.mxu0 0.0
        %350 = vmatpush1.xpose.msra.mxu0 0.0
        %351 = vmatprep.subr.mxu0 0.0
        %352 = vmatpush1.xpose.msra.mxu0 0.0
        %353 = vmatprep.subr.mxu0 0.0
        %354 = vmatpush1.xpose.msra.mxu0 0.0
        %355 = vmatprep.subr.mxu0 0.0
        %356 = vmatpush1.xpose.msra.mxu0 0.0
        %357 = vmatprep.subr.mxu0 0.0
        %358 = vmatpush1.xpose.msra.mxu0 0.0
        %359 = vmatprep.subr.mxu0 0.0
        %360 = vmatpush1.xpose.msra.mxu0 0.0
        %361 = vmatprep.subr.mxu0 0.0
        %362 = vmatpush1.xpose.msra.mxu0 0.0
        %363 = vmatprep.subr.mxu0 0.0
        %364 = vmatpush1.xpose.msra.mxu0 0.0
        %365 = vmatprep.subr.mxu0 0.0
        %366 = vmatpush1.xpose.msra.mxu0 0.0
        %367 = vmatprep.subr.mxu0 0.0
        %368 = vmatpush1.xpose.msra.mxu0 0.0
        %369 = vmatprep.subr.mxu0 0.0
        %370 = vmatpush1.xpose.msra.mxu0 0.0
        %371 = vmatprep.subr.mxu0 0.0
        %372 = vmatpush1.xpose.msra.mxu0 0.0
        %373 = vmatprep.subr.mxu0 0.0
        %374 = vmatpush1.xpose.msra.mxu0 0.0
        %375 = vmatprep.subr.mxu0 0.0
        %376 = vmatpush1.xpose.msra.mxu0 0.0
        %377 = vmatprep.subr.mxu0 0.0
        %378 = vmatpush1.xpose.msra.mxu0 0.0
        %379 = vmatprep.subr.mxu0 0.0
        %380 = vmatpush1.xpose.msra.mxu0 0.0
        %381 = vmatprep.subr.mxu0 0.0
        %382 = vmatpush1.xpose.msra.mxu0 0.0
        %383 = vmatprep.subr.mxu0 0.0
        %384 = vmatpush1.xpose.msra.mxu0 0.0
        %385 = vmatprep.subr.mxu0 0.0
        %386 = vmatpush1.xpose.msra.mxu0 0.0
        %387 = vmatprep.subr.mxu0 0.0
        %388 = vmatpush1.xpose.msra.mxu0 0.0
        %389 = vmatprep.subr.mxu0 0.0
        %390 = vmatpush1.xpose.msra.mxu0 0.0
        %391 = vmatprep.subr.mxu0 0.0
        %392 = vmatpush1.xpose.msra.mxu0 0.0
        %393 = vmatprep.subr.mxu0 0.0
        %394 = vmatpush1.xpose.msra.mxu0 0.0
        %395 = vmatprep.subr.mxu0 0.0
        %396 = vmatpush1.xpose.msra.mxu0 0.0
        %397 = vmatprep.subr.mxu0 0.0
        %398 = vmatpush1.xpose.msra.mxu0 0.0
        %399 = vmatprep.subr.mxu0 0.0
        %400 = vmatpush1.xpose.msra.mxu0 0.0
        %401 = vmatprep.mubr.f32.mxu0 0.0
        %v402 = vand.u32 %v156, 4294901760
        %v403 = vsub.f32 %v156, %v402
        %404 = vmatmul.mubr.f32.gmra.mrb[0].mxu0 %v403
        %v405 = vpop.f32.mrb[0].mxu0
        %v406 = vadd.f32 %v328, %v405
        %v407 = vpop.f32.mrb[0].mxu0
        %408 = vdwg.mxu0
        %409 = vmatprep.subr.mxu0 0.0
        %v410 = vand.u32 %v159, 4294901760
        %411 = vmatpush1.xpose.msra.mxu0 %v410
        %412 = vmatprep.subr.mxu0 0.0
        %v413 = vand.u32 %v162, 4294901760
        %414 = vmatpush1.xpose.msra.mxu0 %v413
        %415 = vmatprep.subr.mxu0 0.0
        %v416 = vand.u32 %v165, 4294901760
        %417 = vmatpush1.xpose.msra.mxu0 %v416
        %418 = vmatprep.subr.mxu0 0.0
        %419 = vmatpush1.xpose.msra.mxu0 0.0
        %420 = vmatprep.subr.mxu0 0.0
        %421 = vmatpush1.xpose.msra.mxu0 0.0
        %422 = vmatprep.subr.mxu0 0.0
        %423 = vmatpush1.xpose.msra.mxu0 0.0
        %424 = vmatprep.subr.mxu0 0.0
        %425 = vmatpush1.xpose.msra.mxu0 0.0
        %426 = vmatprep.subr.mxu0 0.0
        %427 = vmatpush1.xpose.msra.mxu0 0.0
        %428 = vmatprep.subr.mxu0 0.0
        %429 = vmatpush1.xpose.msra.mxu0 0.0
        %430 = vmatprep.subr.mxu0 0.0
        %431 = vmatpush1.xpose.msra.mxu0 0.0
        %432 = vmatprep.subr.mxu0 0.0
        %433 = vmatpush1.xpose.msra.mxu0 0.0
        %434 = vmatprep.subr.mxu0 0.0
        %435 = vmatpush1.xpose.msra.mxu0 0.0
        %436 = vmatprep.subr.mxu0 0.0
        %437 = vmatpush1.xpose.msra.mxu0 0.0
        %438 = vmatprep.subr.mxu0 0.0
        %439 = vmatpush1.xpose.msra.mxu0 0.0
        %440 = vmatprep.subr.mxu0 0.0
        %441 = vmatpush1.xpose.msra.mxu0 0.0
        %442 = vmatprep.subr.mxu0 0.0
        %443 = vmatpush1.xpose.msra.mxu0 0.0
        %444 = vmatprep.subr.mxu0 0.0
        %445 = vmatpush1.xpose.msra.mxu0 0.0
        %446 = vmatprep.subr.mxu0 0.0
        %447 = vmatpush1.xpose.msra.mxu0 0.0
        %448 = vmatprep.subr.mxu0 0.0
        %449 = vmatpush1.xpose.msra.mxu0 0.0
        %450 = vmatprep.subr.mxu0 0.0
        %451 = vmatpush1.xpose.msra.mxu0 0.0
        %452 = vmatprep.subr.mxu0 0.0
        %453 = vmatpush1.xpose.msra.mxu0 0.0
        %454 = vmatprep.subr.mxu0 0.0
        %455 = vmatpush1.xpose.msra.mxu0 0.0
        %456 = vmatprep.subr.mxu0 0.0
        %457 = vmatpush1.xpose.msra.mxu0 0.0
        %458 = vmatprep.subr.mxu0 0.0
        %459 = vmatpush1.xpose.msra.mxu0 0.0
        %460 = vmatprep.subr.mxu0 0.0
        %461 = vmatpush1.xpose.msra.mxu0 0.0
        %462 = vmatprep.subr.mxu0 0.0
        %463 = vmatpush1.xpose.msra.mxu0 0.0
        %464 = vmatprep.subr.mxu0 0.0
        %465 = vmatpush1.xpose.msra.mxu0 0.0
        %466 = vmatprep.subr.mxu0 0.0
        %467 = vmatpush1.xpose.msra.mxu0 0.0
        %468 = vmatprep.subr.mxu0 0.0
        %469 = vmatpush1.xpose.msra.mxu0 0.0
        %470 = vmatprep.subr.mxu0 0.0
        %471 = vmatpush1.xpose.msra.mxu0 0.0
        %472 = vmatprep.subr.mxu0 0.0
        %473 = vmatpush1.xpose.msra.mxu0 0.0
        %474 = vmatprep.subr.mxu0 0.0
        %475 = vmatpush1.xpose.msra.mxu0 0.0
        %476 = vmatprep.mubr.f32.mxu0 0.0
        %v477 = vand.u32 %v156, 4294901760
        %v478 = vsub.f32 %v156, %v477
        %v479 = vand.u32 %v478, 4294901760
        %480 = vmatmul.mubr.f32.gmra.mrb[0].mxu0 %v479
        %v481 = vpop.f32.mrb[0].mxu0
        %v482 = vadd.f32 %v406, %v481
        %v483 = vpop.f32.mrb[0].mxu0
        %484 = vdwg.mxu0
        %485 = vmatprep.subr.mxu0 0.0
        %v486 = vand.u32 %v159, 4294901760
        %v487 = vsub.f32 %v159, %v486
        %v488 = vand.u32 %v487, 4294901760
        %489 = vmatpush1.xpose.msra.mxu0 %v488
        %490 = vmatprep.subr.mxu0 0.0
        %v491 = vand.u32 %v162, 4294901760
        %v492 = vsub.f32 %v162, %v491
        %v493 = vand.u32 %v492, 4294901760
        %494 = vmatpush1.xpose.msra.mxu0 %v493
        %495 = vmatprep.subr.mxu0 0.0
        %v496 = vand.u32 %v165, 4294901760
        %v497 = vsub.f32 %v165, %v496
        %v498 = vand.u32 %v497, 4294901760
        %499 = vmatpush1.xpose.msra.mxu0 %v498
        %500 = vmatprep.subr.mxu0 0.0
        %501 = vmatpush1.xpose.msra.mxu0 0.0
        %502 = vmatprep.subr.mxu0 0.0
        %503 = vmatpush1.xpose.msra.mxu0 0.0
        %504 = vmatprep.subr.mxu0 0.0
        %505 = vmatpush1.xpose.msra.mxu0 0.0
        %506 = vmatprep.subr.mxu0 0.0
        %507 = vmatpush1.xpose.msra.mxu0 0.0
        %508 = vmatprep.subr.mxu0 0.0
        %509 = vmatpush1.xpose.msra.mxu0 0.0
        %510 = vmatprep.subr.mxu0 0.0
        %511 = vmatpush1.xpose.msra.mxu0 0.0
        %512 = vmatprep.subr.mxu0 0.0
        %513 = vmatpush1.xpose.msra.mxu0 0.0
        %514 = vmatprep.subr.mxu0 0.0
        %515 = vmatpush1.xpose.msra.mxu0 0.0
        %516 = vmatprep.subr.mxu0 0.0
        %517 = vmatpush1.xpose.msra.mxu0 0.0
        %518 = vmatprep.subr.mxu0 0.0
        %519 = vmatpush1.xpose.msra.mxu0 0.0
        %520 = vmatprep.subr.mxu0 0.0
        %521 = vmatpush1.xpose.msra.mxu0 0.0
        %522 = vmatprep.subr.mxu0 0.0
        %523 = vmatpush1.xpose.msra.mxu0 0.0
        %524 = vmatprep.subr.mxu0 0.0
        %525 = vmatpush1.xpose.msra.mxu0 0.0
        %526 = vmatprep.subr.mxu0 0.0
        %527 = vmatpush1.xpose.msra.mxu0 0.0
        %528 = vmatprep.subr.mxu0 0.0
        %529 = vmatpush1.xpose.msra.mxu0 0.0
        %530 = vmatprep.subr.mxu0 0.0
        %531 = vmatpush1.xpose.msra.mxu0 0.0
        %532 = vmatprep.subr.mxu0 0.0
        %533 = vmatpush1.xpose.msra.mxu0 0.0
        %534 = vmatprep.subr.mxu0 0.0
        %535 = vmatpush1.xpose.msra.mxu0 0.0
        %536 = vmatprep.subr.mxu0 0.0
        %537 = vmatpush1.xpose.msra.mxu0 0.0
        %538 = vmatprep.subr.mxu0 0.0
        %539 = vmatpush1.xpose.msra.mxu0 0.0
        %540 = vmatprep.subr.mxu0 0.0
        %541 = vmatpush1.xpose.msra.mxu0 0.0
        %542 = vmatprep.subr.mxu0 0.0
        %543 = vmatpush1.xpose.msra.mxu0 0.0
        %544 = vmatprep.subr.mxu0 0.0
        %545 = vmatpush1.xpose.msra.mxu0 0.0
        %546 = vmatprep.subr.mxu0 0.0
        %547 = vmatpush1.xpose.msra.mxu0 0.0
        %548 = vmatprep.subr.mxu0 0.0
        %549 = vmatpush1.xpose.msra.mxu0 0.0
        %550 = vmatprep.subr.mxu0 0.0
        %551 = vmatpush1.xpose.msra.mxu0 0.0
        %552 = vmatprep.subr.mxu0 0.0
        %553 = vmatpush1.xpose.msra.mxu0 0.0
        %554 = vmatprep.subr.mxu0 0.0
        %555 = vmatpush1.xpose.msra.mxu0 0.0
        %556 = vmatprep.subr.mxu0 0.0
        %557 = vmatpush1.xpose.msra.mxu0 0.0
        %558 = vmatprep.mubr.f32.mxu0 0.0
        %v559 = vand.u32 %v156, 4294901760
        %560 = vmatmul.mubr.f32.gmra.mrb[0].mxu0 %v559
        %v561 = vpop.f32.mrb[0].mxu0
        %v562 = vadd.f32 %v482, %v561
        %v563 = vpop.f32.mrb[0].mxu0
        %564 = vdwg.mxu0
        %565 = vmatprep.subr.mxu0 0.0
        %v566 = vand.u32 %v159, 4294901760
        %567 = vmatpush1.xpose.msra.mxu0 %v566
        %568 = vmatprep.subr.mxu0 0.0
        %v569 = vand.u32 %v162, 4294901760
        %570 = vmatpush1.xpose.msra.mxu0 %v569
        %571 = vmatprep.subr.mxu0 0.0
        %v572 = vand.u32 %v165, 4294901760
        %573 = vmatpush1.xpose.msra.mxu0 %v572
        %574 = vmatprep.subr.mxu0 0.0
        %575 = vmatpush1.xpose.msra.mxu0 0.0
        %576 = vmatprep.subr.mxu0 0.0
        %577 = vmatpush1.xpose.msra.mxu0 0.0
        %578 = vmatprep.subr.mxu0 0.0
        %579 = vmatpush1.xpose.msra.mxu0 0.0
        %580 = vmatprep.subr.mxu0 0.0
        %581 = vmatpush1.xpose.msra.mxu0 0.0
        %582 = vmatprep.subr.mxu0 0.0
        %583 = vmatpush1.xpose.msra.mxu0 0.0
        %584 = vmatprep.subr.mxu0 0.0
        %585 = vmatpush1.xpose.msra.mxu0 0.0
        %586 = vmatprep.subr.mxu0 0.0
        %587 = vmatpush1.xpose.msra.mxu0 0.0
        %588 = vmatprep.subr.mxu0 0.0
        %589 = vmatpush1.xpose.msra.mxu0 0.0
        %590 = vmatprep.subr.mxu0 0.0
        %591 = vmatpush1.xpose.msra.mxu0 0.0
        %592 = vmatprep.subr.mxu0 0.0
        %593 = vmatpush1.xpose.msra.mxu0 0.0
        %594 = vmatprep.subr.mxu0 0.0
        %595 = vmatpush1.xpose.msra.mxu0 0.0
        %596 = vmatprep.subr.mxu0 0.0
        %597 = vmatpush1.xpose.msra.mxu0 0.0
        %598 = vmatprep.subr.mxu0 0.0
        %599 = vmatpush1.xpose.msra.mxu0 0.0
        %600 = vmatprep.subr.mxu0 0.0
        %601 = vmatpush1.xpose.msra.mxu0 0.0
        %602 = vmatprep.subr.mxu0 0.0
        %603 = vmatpush1.xpose.msra.mxu0 0.0
        %604 = vmatprep.subr.mxu0 0.0
        %605 = vmatpush1.xpose.msra.mxu0 0.0
        %606 = vmatprep.subr.mxu0 0.0
        %607 = vmatpush1.xpose.msra.mxu0 0.0
        %608 = vmatprep.subr.mxu0 0.0
        %609 = vmatpush1.xpose.msra.mxu0 0.0
        %610 = vmatprep.subr.mxu0 0.0
        %611 = vmatpush1.xpose.msra.mxu0 0.0
        %612 = vmatprep.subr.mxu0 0.0
        %613 = vmatpush1.xpose.msra.mxu0 0.0
        %614 = vmatprep.subr.mxu0 0.0
        %615 = vmatpush1.xpose.msra.mxu0 0.0
        %616 = vmatprep.subr.mxu0 0.0
        %617 = vmatpush1.xpose.msra.mxu0 0.0
        %618 = vmatprep.subr.mxu0 0.0
        %619 = vmatpush1.xpose.msra.mxu0 0.0
        %620 = vmatprep.subr.mxu0 0.0
        %621 = vmatpush1.xpose.msra.mxu0 0.0
        %622 = vmatprep.subr.mxu0 0.0
        %623 = vmatpush1.xpose.msra.mxu0 0.0
        %624 = vmatprep.subr.mxu0 0.0
        %625 = vmatpush1.xpose.msra.mxu0 0.0
        %626 = vmatprep.subr.mxu0 0.0
        %627 = vmatpush1.xpose.msra.mxu0 0.0
        %628 = vmatprep.subr.mxu0 0.0
        %629 = vmatpush1.xpose.msra.mxu0 0.0
        %630 = vmatprep.subr.mxu0 0.0
        %631 = vmatpush1.xpose.msra.mxu0 0.0
        %632 = vmatprep.mubr.f32.mxu0 0.0
        %v633 = vand.u32 %v156, 4294901760
        %634 = vmatmul.mubr.f32.gmra.mrb[0].mxu0 %v633
        %v635 = vpop.f32.mrb[0].mxu0
        %v636 = vadd.f32 %v562, %v635
        %v637 = vpop.f32.mrb[0].mxu0
        %638 = vdwg.mxu0
        %v639 = vmul.f32 %v636, 20.0
        %v640 = vmul.f32 %v639, 1.442695
        %v641 = vpow.pop %v640
        %v642 = vlaneseq
        %v643 = vshrl.u32 %v642, 7
        %v644 = vstv %s148
        %v645 = vadd.s32 %v643, %v644
        %vm646 = vcmp.lt.s32.totalorder %v645, 12
        %v647 = vsub.s32 %v645, 12
        %v648 = vsel %vm646, %v645, %v647
        %v649 = vadd.s32 %v645, 12
        %v650 = vsel %vm646, %v649, %v647
        %v651 = vlaneseq
        %v652 = vand.u32 %v651, 127
        %vm653 = vcmp.eq.s32.totalorder %v652, %v650
        %v654 = vsel %vm653, %v639, 0.0
        %vm655 = vcmask 195584
        %v656 = vsel %vm655, %v654, 0.0
        %657 = vadd.xlane.f32.xlu0 %v656
        %v658 = vpop.xlane.xlu0 %657
        %v659 = vmul.f32 %v658, 1.442695
        %v660 = vpow.pop %v659
        %vm661 = vcmp.eq.s32.totalorder %v652, %v648
        %v662 = vadd.s32 %v648, 12
        %vm663 = vcmp.eq.s32.totalorder %v652, %v662
        %vm664 = vmor %vm661, %vm663
        %v665 = vsel %vm664, 0.0, %v641
        %v666 = vsel %vm655, %v665, 0.0
        %667 = vadd.xlane.f32.xlu0 %v666
        %v668 = vpop.xlane.xlu0 %667
        %v669 = vadd.f32 %v668, %v660
        %v670 = vlog2.pop %v669
        %v671 = vmul.f32 %v670, 0.6931472
        %v672 = vsub.f32 %v671, %v658
        %vm673 = vcmp.eq.s32.totalorder %v652, 0
        %vm674 = vcmp.eq.s32.totalorder %v652, 1
        %v675 = vsel %vm674, %v668, %v672
        %v676 = vsel %vm673, %v660, %v675
        %vm677 = vcmask 23552
        %678 = vst.msk [vmem:[%s147] sm:$0xff] %vm677, %v676
        %vm679 = vcmp.lt.s32.totalorder %v652, %v648
        %v680 = vadd.s32 %v648, 11
        %vm681 = vcmp.lt.s32.totalorder %v652, %v680
        %683 = vrot.lane.b32.xlu0 %v641, 127
        %v684 = vpop.permute.xlu0 %683
        %686 = vrot.lane.b32.xlu0 %v641, 126
        %v687 = vpop.permute.xlu0 %686
        %v689 = vsel %vm681, %v684, %v687
        %v690 = vsel %vm679, %v641, %v689
        %691 = vst [vmem:[%s143] sm:$0xff] 0.0
        %vm692 = vcmask 179200
        %693 = vst.msk [vmem:[%s143] sm:$0xff] %vm692, %v690
        %p694 = scmp.lt.s32.totalorder %s18, 2
        %s695 = scalar_select %p694, %s18, 2
        %s696 = smul.addr %s695, 8
        %s697 = scalar_lea.vmem %s1, %s696
        %s698 = sand.u32 %s73, 1
        %s699 = scalar_lea.sflag [#allocation4], %s698
        %s700 = sand.u32 %s73, 1
        %s701 = smul.addr %s700, 8
        %s702 = scalar_lea.vmem [#allocation5], %s701
        // Predicated region
        $region29: #{tpu_custom_call.1} parent=23 // pred_check
          %p703 = pneg %p57
        $region30: #{tpu_custom_call.1} parent=23 // pred_check_branch
          %705 = sbr.rel (%p703) target = $region32
        $region31: #{tpu_custom_call.1} parent=23 // pred_region
          _
        $region32: #{tpu_custom_call.1} parent=23 // pred_fallthru
          _
        // Predicated region
        $region33: #{tpu_custom_call.1} parent=23 // pred_check
          %p706 = pneg %p83
        $region34: #{tpu_custom_call.1} parent=23 // pred_check_branch
          %708 = sbr.rel (%p706) target = $region36
        $region35: #{tpu_custom_call.1} parent=23 // pred_region
          %s710 = ssub.s32 128, 128
          %711 = vsyncadd %s699, %s710
          %s712 = smul.addr %s18, 128
          %s713 = scalar_lea.hbm %s2, %s712
          %s715 = sshll.u32 %s702, 4
          %s716 = int_to_ptr.vmem [resolvable:$true] %s715
          %718 = dma.vmem_to_hbm [thread:$0]  %s716, 128, %s713, %s699
        $region36: #{tpu_custom_call.1} parent=23 // pred_fallthru
          _
      $region24: #{tpu_custom_call.1} parent=5 // pred_fallthru
        _
      %p719 = scmp.le.s32.totalorder 2, %s13
      // Predicated region
      $region37: #{tpu_custom_call.1} parent=5 // pred_check
        %p720 = pneg %p719
      $region38: #{tpu_custom_call.1} parent=5 // pred_check_branch
        %722 = sbr.rel (%p720) target = $region40
      $region39: #{tpu_custom_call.1} parent=5 // pred_region
        %s723 = ssub.s32 %s13, 2
        // Predicated region
        $region41: #{tpu_custom_call.1} parent=39 // pred_check
          %p724 = pneg %p63
        $region42: #{tpu_custom_call.1} parent=39 // pred_check_branch
          %726 = sbr.rel (%p724) target = $region44
        $region43: #{tpu_custom_call.1} parent=39 // pred_region
          %p727 = scmp.lt.s32.totalorder %s19, 2
          %s728 = scalar_select %p727, %s19, 2
          %s729 = smul.addr %s728, 8
          %s730 = scalar_lea.vmem %s1, %s729
        $region44: #{tpu_custom_call.1} parent=39 // pred_fallthru
          _
        // Predicated region
        $region45: #{tpu_custom_call.1} parent=39 // pred_check
          %p731 = pneg %p89
        $region46: #{tpu_custom_call.1} parent=39 // pred_check_branch
          %733 = sbr.rel (%p731) target = $region48
        $region47: #{tpu_custom_call.1} parent=39 // pred_region
          %s734 = sand.u32 %s74, 1
          %s735 = scalar_lea.sflag [#allocation4], %s734
          %s736 = sand.u32 %s74, 1
          %s737 = smul.addr %s736, 8
          %s738 = scalar_lea.vmem [#allocation5], %s737
          %739 = dma.done %s735, 128
        $region48: #{tpu_custom_call.1} parent=39 // pred_fallthru
          _
      $region40: #{tpu_custom_call.1} parent=5 // pred_fallthru
        _
    $region6: #{tpu_custom_call.1} parent=1 // loop_footer
      %s17 = sadd.s32 1, %s13
    $region7: #{tpu_custom_call.1} parent=1 // loop_footer_branch
      %12 = sbr.rel target = $region3
    $region8: #{tpu_custom_call.1} parent=1 // loop_exit
      _
    %740 = vsyncpa [#allocation3], 1
    %s741 = scalar_lea.sflag [#allocation3], 1
    %742 = vsyncpa %s741, 1
    %743 = vsyncpa [#allocation4], 1
    %s744 = scalar_lea.sflag [#allocation4], 1
    %745 = vsyncpa %s744, 1

// kernel: tpu_custom_call.1
$region0: #{tpu_custom_call.1}
  #allocation0 [shape = 'u32[]', space=smem, size = 0x4, offset = 0x4, fixed_abs, tag = 'smem constant byte address 0x4 - core index']
  #allocation1 [shape = 'u32[144,128]{1,0:T(1,128)}', space=vmem, size = 0x12000, scoped, tag = 'internal scratch']
  %s0 = inlined_call_operand.hbm [shape: f32[24,32], index: 0, kind: input, shape index: {}]
  %s1 = inlined_call_operand.vmem [shape: f32[24,3], index: 1, kind: output, shape index: {0}]
  %s2 = inlined_call_operand.hbm [shape: f32[24,128], index: 2, kind: output, shape index: {1}]
  %3 = xla_tuple %s1, %s2
  %s4 = sld [smem:[#allocation0]]
  $region49: #{tpu_custom_call.1} parent=0
    _
  %s6 = ssub.s32 1, %s4
  %s7 = scalar_select 0, %s6, %s4
  $region1: #{tpu_custom_call.1} parent=0
    #allocation2 [shape = 'u8[12288]{0}', space=vmem, size = 0x3000, scoped, tag = 'input window, operand 0, single buffered']
    #allocation3 [shape = 's32[2]{0}', space=sflag, size = 0x8, scoped, tag = 'scoped memory for tpu_custom_call.1']
    #allocation4 [shape = 's32[2]{0}', space=sflag, size = 0x8, scoped, tag = 'scoped memory for tpu_custom_call.1']
    #allocation5 [shape = 'u8[8192]{0}', space=vmem, size = 0x2000, scoped, tag = 'output window, operand 1']
    %8 = vsyncpa [#allocation3], 0
    %9 = vsyncpa [#allocation4], 0
    %s10 = scalar_lea.sflag [#allocation4], 1
    %11 = vsyncpa %s10, 0
    loop: start=0, step=1, limit=5
    $region2: #{tpu_custom_call.1} parent=1 // loop_pre_header
      _
    $region3: #{tpu_custom_call.1} parent=1 // loop_header
      %s13 = sphi 0, %s17
      %p14 = scmp.ge.s32.totalorder %s13, 5
      %s21 = sphi 0, %s21
      %s23 = sphi 0, %s21
      %s24 = sphi 0, %s23
      %s38 = sphi 0, %s24
      %s44 = sphi 0, %s46
      %s47 = sphi 0, %s44
      %s48 = sphi 0, %s47
      %s64 = sphi 0, %s48
      %s70 = sphi 0, %s72
      %s73 = sphi 0, %s70
      %s74 = sphi 0, %s73
      %s90 = sphi 0, %s74
    $region4: #{tpu_custom_call.1} parent=1 // loop_header_branch
      %16 = sbr.rel (%p14) target = $region8
    $region5: #{tpu_custom_call.1} parent=1 // loop_body
      %s18 = ssub.s32 %s13, 1
      %s19 = ssub.s32 %s13, 2
      %s20 = sadd.s32 %s13, 1
      %s22 = sadd.s32 %s21, 1
      %p25 = scmp.eq.s32.totalorder %s13, 2
      %p26 = scmp.ne.s32.totalorder %s21, %s23
      %p27 = scmp.eq.s32.totalorder %s13, 0
      %p28 = por %p26, %p27
      %p29 = scmp.ne.s32.totalorder %s21, %s23
      %p30 = scmp.eq.s32.totalorder %s18, 2
      %p31 = por %p29, %p30
      %p32 = scmp.ne.s32.totalorder %s23, %s24
      %p33 = scmp.eq.s32.totalorder %s18, 0
      %p34 = por %p32, %p33
      %p35 = scmp.ne.s32.totalorder %s23, %s24
      %p36 = scmp.eq.s32.totalorder %s19, 2
      %p37 = por %p35, %p36
      %p39 = scmp.ne.s32.totalorder %s24, %s38
      %p40 = scmp.eq.s32.totalorder %s19, 0
      %p41 = por %p39, %p40
      %s42 = ssub.s32 %s13, %s20
      %p43 = scmp.eq.s32.totalorder %s42, 0
      %s45 = sadd.s32 %s44, 1
      %s46 = scalar_select %p43, %s44, %s45
      %p49 = pneg %p43
      %p50 = scmp.eq.s32.totalorder %s13, 2
      %p51 = por %p49, %p50
      %p52 = scmp.ne.s32.totalorder %s44, %s47
      %p53 = scmp.eq.s32.totalorder %s13, 0
      %p54 = por %p52, %p53
      %p55 = scmp.ne.s32.totalorder %s44, %s47
      %p56 = scmp.eq.s32.totalorder %s18, 2
      %p57 = por %p55, %p56
      %p58 = scmp.ne.s32.totalorder %s47, %s48
      %p59 = scmp.eq.s32.totalorder %s18, 0
      %p60 = por %p58, %p59
      %p61 = scmp.ne.s32.totalorder %s47, %s48
      %p62 = scmp.eq.s32.totalorder %s19, 2
      %p63 = por %p61, %p62
      %p65 = scmp.ne.s32.totalorder %s48, %s64
      %p66 = scmp.eq.s32.totalorder %s19, 0
      %p67 = por %p65, %p66
      %s68 = ssub.s32 %s13, %s20
      %p69 = scmp.eq.s32.totalorder %s68, 0
      %s71 = sadd.s32 %s70, 1
      %s72 = scalar_select %p69, %s70, %s71
      %p75 = pneg %p69
      %p76 = scmp.eq.s32.totalorder %s13, 2
      %p77 = por %p75, %p76
      %p78 = scmp.ne.s32.totalorder %s70, %s73
      %p79 = scmp.eq.s32.totalorder %s13, 0
      %p80 = por %p78, %p79
      %p81 = scmp.ne.s32.totalorder %s70, %s73
      %p82 = scmp.eq.s32.totalorder %s18, 2
      %p83 = por %p81, %p82
      %p84 = scmp.ne.s32.totalorder %s73, %s74
      %p85 = scmp.eq.s32.totalorder %s18, 0
      %p86 = por %p84, %p85
      %p87 = scmp.ne.s32.totalorder %s73, %s74
      %p88 = scmp.eq.s32.totalorder %s19, 2
      %p89 = por %p87, %p88
      %p91 = scmp.ne.s32.totalorder %s74, %s90
      %p92 = scmp.eq.s32.totalorder %s19, 0
      %p93 = por %p91, %p92
      %p94 = scmp.le.s32.totalorder 1, %s13
      %p95 = scmp.lt.s32.totalorder %s13, 4
      %p96 = pnand %p94, %p95
      %p97 = pneg %p96
      // Predicated region
      $region9: #{tpu_custom_call.1} parent=5 // pred_check
        _
      $region10: #{tpu_custom_call.1} parent=5 // pred_check_branch
        %99 = sbr.rel (%p96) target = $region12
      $region11: #{tpu_custom_call.1} parent=5 // pred_region
        %s100 = ssub.s32 %s13, 1
        // Predicated region
        $region13: #{tpu_custom_call.1} parent=11 // pred_check
          %p101 = pneg %p34
        $region14: #{tpu_custom_call.1} parent=11 // pred_check_branch
          %103 = sbr.rel (%p101) target = $region16
        $region15: #{tpu_custom_call.1} parent=11 // pred_region
          %s105 = ssub.s32 384, 384
          %106 = vsyncadd [#allocation3], %s105
          %s107 = sshll.u32 [#allocation2], 4
          %s108 = int_to_ptr.vmem [resolvable:$true] %s107
          %113 = dma.hbm_to_vmem [thread:$0]  %s0, 384, %s108, [#allocation3], 128, 128, 8
        $region16: #{tpu_custom_call.1} parent=11 // pred_fallthru
          _
      $region12: #{tpu_custom_call.1} parent=5 // pred_fallthru
        _
      %p114 = scmp.lt.s32.totalorder %s13, 3
      // Predicated region
      $region17: #{tpu_custom_call.1} parent=5 // pred_check
        %p115 = pneg %p114
      $region18: #{tpu_custom_call.1} parent=5 // pred_check_branch
        %117 = sbr.rel (%p115) target = $region20
      $region19: #{tpu_custom_call.1} parent=5 // pred_region
        _
      $region20: #{tpu_custom_call.1} parent=5 // pred_fallthru
        _
      %p118 = scmp.le.s32.totalorder 1, %s13
      %p119 = scmp.lt.s32.totalorder %s13, 4
      %p120 = pnand %p118, %p119
      %p121 = pneg %p120
      // Predicated region
      $region21: #{tpu_custom_call.1} parent=5 // pred_check
        _
      $region22: #{tpu_custom_call.1} parent=5 // pred_check_branch
        %123 = sbr.rel (%p120) target = $region24
      $region23: #{tpu_custom_call.1} parent=5 // pred_region
        %s124 = ssub.s32 %s13, 1
        // Predicated region
        $region25: #{tpu_custom_call.1} parent=23 // pred_check
          %p125 = pneg %p34
        $region26: #{tpu_custom_call.1} parent=23 // pred_check_branch
          %127 = sbr.rel (%p125) target = $region28
        $region27: #{tpu_custom_call.1} parent=23 // pred_region
          %128 = dma.done [#allocation3], 384
        $region28: #{tpu_custom_call.1} parent=23 // pred_fallthru
          _
        %p129 = pneg %p34
        %p130 = pneg %p31
        %p131 = pneg %p60
        %p132 = pneg %p57
        %p133 = scmp.lt.s32.totalorder %s18, 2
        %s134 = scalar_select %p133, %s18, 2
        %s135 = smul.addr %s134, 8
        %s136 = scalar_lea.vmem %s1, %s135
        %p137 = pneg %p86
        %p138 = pneg %p83
        %s139 = sand.u32 %s73, 1
        %s140 = scalar_lea.sflag [#allocation4], %s139
        %s141 = sand.u32 %s73, 1
        %s142 = smul.addr %s141, 8
        %s143 = scalar_lea.vmem [#allocation5], %s142
        %p144 = scmp.lt.s32.totalorder %s18, 2
        %s145 = scalar_select %p144, %s18, 2
        %s146 = smul.addr %s145, 8
        %s147 = scalar_lea.vmem %s1, %s146
        %s148 = smul.u32 %s18, 8
        %v149 = vld [vmem:[#allocation2] sm:$0xff]
        %v150 = vld [vmem:[#allocation2 + $0x8] sm:$0xff]
        %v151 = vld [vmem:[#allocation2 + $0x10] sm:$0xff]
        %s152 = scalar_lea.vmem [#allocation2], %s148
        %v153 = vld [vmem:[%s152] sm:$0xff]
        %vm154 = vcmask 261120
        %v156 = vsel %vm154, %v153, 0
        %v159 = vsel %vm154, %v149, 0
        %v162 = vsel %vm154, %v150, 0
        %v165 = vsel %vm154, %v151, 0
        %167 = vmatprep.subr.mxu0 0.0
        %v168 = vand.u32 %v159, 4294901760
        %169 = vmatpush1.xpose.msra.mxu0 %v168
        %170 = vmatprep.subr.mxu0 0.0
        %v171 = vand.u32 %v162, 4294901760
        %172 = vmatpush1.xpose.msra.mxu0 %v171
        %173 = vmatprep.subr.mxu0 0.0
        %v174 = vand.u32 %v165, 4294901760
        %175 = vmatpush1.xpose.msra.mxu0 %v174
        %176 = vmatprep.subr.mxu0 0.0
        %177 = vmatpush1.xpose.msra.mxu0 0.0
        %178 = vmatprep.subr.mxu0 0.0
        %179 = vmatpush1.xpose.msra.mxu0 0.0
        %180 = vmatprep.subr.mxu0 0.0
        %181 = vmatpush1.xpose.msra.mxu0 0.0
        %182 = vmatprep.subr.mxu0 0.0
        %183 = vmatpush1.xpose.msra.mxu0 0.0
        %184 = vmatprep.subr.mxu0 0.0
        %185 = vmatpush1.xpose.msra.mxu0 0.0
        %186 = vmatprep.subr.mxu0 0.0
        %187 = vmatpush1.xpose.msra.mxu0 0.0
        %188 = vmatprep.subr.mxu0 0.0
        %189 = vmatpush1.xpose.msra.mxu0 0.0
        %190 = vmatprep.subr.mxu0 0.0
        %191 = vmatpush1.xpose.msra.mxu0 0.0
        %192 = vmatprep.subr.mxu0 0.0
        %193 = vmatpush1.xpose.msra.mxu0 0.0
        %194 = vmatprep.subr.mxu0 0.0
        %195 = vmatpush1.xpose.msra.mxu0 0.0
        %196 = vmatprep.subr.mxu0 0.0
        %197 = vmatpush1.xpose.msra.mxu0 0.0
        %198 = vmatprep.subr.mxu0 0.0
        %199 = vmatpush1.xpose.msra.mxu0 0.0
        %200 = vmatprep.subr.mxu0 0.0
        %201 = vmatpush1.xpose.msra.mxu0 0.0
        %202 = vmatprep.subr.mxu0 0.0
        %203 = vmatpush1.xpose.msra.mxu0 0.0
        %204 = vmatprep.subr.mxu0 0.0
        %205 = vmatpush1.xpose.msra.mxu0 0.0
        %206 = vmatprep.subr.mxu0 0.0
        %207 = vmatpush1.xpose.msra.mxu0 0.0
        %208 = vmatprep.subr.mxu0 0.0
        %209 = vmatpush1.xpose.msra.mxu0 0.0
        %210 = vmatprep.subr.mxu0 0.0
        %211 = vmatpush1.xpose.msra.mxu0 0.0
        %212 = vmatprep.subr.mxu0 0.0
        %213 = vmatpush1.xpose.msra.mxu0 0.0
        %214 = vmatprep.subr.mxu0 0.0
        %215 = vmatpush1.xpose.msra.mxu0 0.0
        %216 = vmatprep.subr.mxu0 0.0
        %217 = vmatpush1.xpose.msra.mxu0 0.0
        %218 = vmatprep.subr.mxu0 0.0
        %219 = vmatpush1.xpose.msra.mxu0 0.0
        %220 = vmatprep.subr.mxu0 0.0
        %221 = vmatpush1.xpose.msra.mxu0 0.0
        %222 = vmatprep.subr.mxu0 0.0
        %223 = vmatpush1.xpose.msra.mxu0 0.0
        %224 = vmatprep.subr.mxu0 0.0
        %225 = vmatpush1.xpose.msra.mxu0 0.0
        %226 = vmatprep.subr.mxu0 0.0
        %227 = vmatpush1.xpose.msra.mxu0 0.0
        %228 = vmatprep.subr.mxu0 0.0
        %229 = vmatpush1.xpose.msra.mxu0 0.0
        %230 = vmatprep.subr.mxu0 0.0
        %231 = vmatpush1.xpose.msra.mxu0 0.0
        %232 = vmatprep.subr.mxu0 0.0
        %233 = vmatpush1.xpose.msra.mxu0 0.0
        %234 = vmatprep.mubr.f32.mxu0 0.0
        %v235 = vand.u32 %v156, 4294901760
        %v236 = vsub.f32 %v156, %v235
        %v237 = vand.u32 %v236, 4294901760
        %v238 = vsub.f32 %v236, %v237
        %v239 = vand.u32 %v238, 4294901760
        %240 = vmatmul.mubr.f32.gmra.mrb[0].mxu0 %v239
        %v241 = vpop.f32.mrb[0].mxu0
        %v242 = vadd.f32 0.0, %v241
        %v243 = vpop.f32.mrb[0].mxu0
        %244 = vdwg.mxu0
        %245 = vmatprep.subr.mxu0 0.0
        %v246 = vand.u32 %v159, 4294901760
        %v247 = vsub.f32 %v159, %v246
        %v248 = vand.u32 %v247, 4294901760
        %v249 = vsub.f32 %v247, %v248
        %v250 = vand.u32 %v249, 4294901760
        %251 = vmatpush1.xpose.msra.mxu0 %v250
        %252 = vmatprep.subr.mxu0 0.0
        %v253 = vand.u32 %v162, 4294901760
        %v254 = vsub.f32 %v162, %v253
        %v255 = vand.u32 %v254, 4294901760
        %v256 = vsub.f32 %v254, %v255
        %v257 = vand.u32 %v256, 4294901760
        %258 = vmatpush1.xpose.msra.mxu0 %v257
        %259 = vmatprep.subr.mxu0 0.0
        %v260 = vand.u32 %v165, 4294901760
        %v261 = vsub.f32 %v165, %v260
        %v262 = vand.u32 %v261, 4294901760
        %v263 = vsub.f32 %v261, %v262
        %v264 = vand.u32 %v263, 4294901760
        %265 = vmatpush1.xpose.msra.mxu0 %v264
        %266 = vmatprep.subr.mxu0 0.0
        %267 = vmatpush1.xpose.msra.mxu0 0.0
        %268 = vmatprep.subr.mxu0 0.0
        %269 = vmatpush1.xpose.msra.mxu0 0.0
        %270 = vmatprep.subr.mxu0 0.0
        %271 = vmatpush1.xpose.msra.mxu0 0.0
        %272 = vmatprep.subr.mxu0 0.0
        %273 = vmatpush1.xpose.msra.mxu0 0.0
        %274 = vmatprep.subr.mxu0 0.0
        %275 = vmatpush1.xpose.msra.mxu0 0.0
        %276 = vmatprep.subr.mxu0 0.0
        %277 = vmatpush1.xpose.msra.mxu0 0.0
        %278 = vmatprep.subr.mxu0 0.0
        %279 = vmatpush1.xpose.msra.mxu0 0.0
        %280 = vmatprep.subr.mxu0 0.0
        %281 = vmatpush1.xpose.msra.mxu0 0.0
        %282 = vmatprep.subr.mxu0 0.0
        %283 = vmatpush1.xpose.msra.mxu0 0.0
        %284 = vmatprep.subr.mxu0 0.0
        %285 = vmatpush1.xpose.msra.mxu0 0.0
        %286 = vmatprep.subr.mxu0 0.0
        %287 = vmatpush1.xpose.msra.mxu0 0.0
        %288 = vmatprep.subr.mxu0 0.0
        %289 = vmatpush1.xpose.msra.mxu0 0.0
        %290 = vmatprep.subr.mxu0 0.0
        %291 = vmatpush1.xpose.msra.mxu0 0.0
        %292 = vmatprep.subr.mxu0 0.0
        %293 = vmatpush1.xpose.msra.mxu0 0.0
        %294 = vmatprep.subr.mxu0 0.0
        %295 = vmatpush1.xpose.msra.mxu0 0.0
        %296 = vmatprep.subr.mxu0 0.0
        %297 = vmatpush1.xpose.msra.mxu0 0.0
        %298 = vmatprep.subr.mxu0 0.0
        %299 = vmatpush1.xpose.msra.mxu0 0.0
        %300 = vmatprep.subr.mxu0 0.0
        %301 = vmatpush1.xpose.msra.mxu0 0.0
        %302 = vmatprep.subr.mxu0 0.0
        %303 = vmatpush1.xpose.msra.mxu0 0.0
        %304 = vmatprep.subr.mxu0 0.0
        %305 = vmatpush1.xpose.msra.mxu0 0.0
        %306 = vmatprep.subr.mxu0 0.0
        %307 = vmatpush1.xpose.msra.mxu0 0.0
        %308 = vmatprep.subr.mxu0 0.0
        %309 = vmatpush1.xpose.msra.mxu0 0.0
        %310 = vmatprep.subr.mxu0 0.0
        %311 = vmatpush1.xpose.msra.mxu0 0.0
        %312 = vmatprep.subr.mxu0 0.0
        %313 = vmatpush1.xpose.msra.mxu0 0.0
        %314 = vmatprep.subr.mxu0 0.0
        %315 = vmatpush1.xpose.msra.mxu0 0.0
        %316 = vmatprep.subr.mxu0 0.0
        %317 = vmatpush1.xpose.msra.mxu0 0.0
        %318 = vmatprep.subr.mxu0 0.0
        %319 = vmatpush1.xpose.msra.mxu0 0.0
        %320 = vmatprep.subr.mxu0 0.0
        %321 = vmatpush1.xpose.msra.mxu0 0.0
        %322 = vmatprep.subr.mxu0 0.0
        %323 = vmatpush1.xpose.msra.mxu0 0.0
        %324 = vmatprep.mubr.f32.mxu0 0.0
        %v325 = vand.u32 %v156, 4294901760
        %326 = vmatmul.mubr.f32.gmra.mrb[0].mxu0 %v325
        %v327 = vpop.f32.mrb[0].mxu0
        %v328 = vadd.f32 %v242, %v327
        %v329 = vpop.f32.mrb[0].mxu0
        %330 = vdwg.mxu0
        %331 = vmatprep.subr.mxu0 0.0
        %v332 = vand.u32 %v159, 4294901760
        %v333 = vsub.f32 %v159, %v332
        %334 = vmatpush1.xpose.msra.mxu0 %v333
        %335 = vmatprep.subr.mxu0 0.0
        %v336 = vand.u32 %v162, 4294901760
        %v337 = vsub.f32 %v162, %v336
        %338 = vmatpush1.xpose.msra.mxu0 %v337
        %339 = vmatprep.subr.mxu0 0.0
        %v340 = vand.u32 %v165, 4294901760
        %v341 = vsub.f32 %v165, %v340
        %342 = vmatpush1.xpose.msra.mxu0 %v341
        %343 = vmatprep.subr.mxu0 0.0
        %344 = vmatpush1.xpose.msra.mxu0 0.0
        %345 = vmatprep.subr.mxu0 0.0
        %346 = vmatpush1.xpose.msra.mxu0 0.0
        %347 = vmatprep.subr.mxu0 0.0
        %348 = vmatpush1.xpose.msra.mxu0 0.0
        %349 = vmatprep.subr.mxu0 0.0
        %350 = vmatpush1.xpose.msra.mxu0 0.0
        %351 = vmatprep.subr.mxu0 0.0
        %352 = vmatpush1.xpose.msra.mxu0 0.0
        %353 = vmatprep.subr.mxu0 0.0
        %354 = vmatpush1.xpose.msra.mxu0 0.0
        %355 = vmatprep.subr.mxu0 0.0
        %356 = vmatpush1.xpose.msra.mxu0 0.0
        %357 = vmatprep.subr.mxu0 0.0
        %358 = vmatpush1.xpose.msra.mxu0 0.0
        %359 = vmatprep.subr.mxu0 0.0
        %360 = vmatpush1.xpose.msra.mxu0 0.0
        %361 = vmatprep.subr.mxu0 0.0
        %362 = vmatpush1.xpose.msra.mxu0 0.0
        %363 = vmatprep.subr.mxu0 0.0
        %364 = vmatpush1.xpose.msra.mxu0 0.0
        %365 = vmatprep.subr.mxu0 0.0
        %366 = vmatpush1.xpose.msra.mxu0 0.0
        %367 = vmatprep.subr.mxu0 0.0
        %368 = vmatpush1.xpose.msra.mxu0 0.0
        %369 = vmatprep.subr.mxu0 0.0
        %370 = vmatpush1.xpose.msra.mxu0 0.0
        %371 = vmatprep.subr.mxu0 0.0
        %372 = vmatpush1.xpose.msra.mxu0 0.0
        %373 = vmatprep.subr.mxu0 0.0
        %374 = vmatpush1.xpose.msra.mxu0 0.0
        %375 = vmatprep.subr.mxu0 0.0
        %376 = vmatpush1.xpose.msra.mxu0 0.0
        %377 = vmatprep.subr.mxu0 0.0
        %378 = vmatpush1.xpose.msra.mxu0 0.0
        %379 = vmatprep.subr.mxu0 0.0
        %380 = vmatpush1.xpose.msra.mxu0 0.0
        %381 = vmatprep.subr.mxu0 0.0
        %382 = vmatpush1.xpose.msra.mxu0 0.0
        %383 = vmatprep.subr.mxu0 0.0
        %384 = vmatpush1.xpose.msra.mxu0 0.0
        %385 = vmatprep.subr.mxu0 0.0
        %386 = vmatpush1.xpose.msra.mxu0 0.0
        %387 = vmatprep.subr.mxu0 0.0
        %388 = vmatpush1.xpose.msra.mxu0 0.0
        %389 = vmatprep.subr.mxu0 0.0
        %390 = vmatpush1.xpose.msra.mxu0 0.0
        %391 = vmatprep.subr.mxu0 0.0
        %392 = vmatpush1.xpose.msra.mxu0 0.0
        %393 = vmatprep.subr.mxu0 0.0
        %394 = vmatpush1.xpose.msra.mxu0 0.0
        %395 = vmatprep.subr.mxu0 0.0
        %396 = vmatpush1.xpose.msra.mxu0 0.0
        %397 = vmatprep.subr.mxu0 0.0
        %398 = vmatpush1.xpose.msra.mxu0 0.0
        %399 = vmatprep.subr.mxu0 0.0
        %400 = vmatpush1.xpose.msra.mxu0 0.0
        %401 = vmatprep.mubr.f32.mxu0 0.0
        %v402 = vand.u32 %v156, 4294901760
        %v403 = vsub.f32 %v156, %v402
        %404 = vmatmul.mubr.f32.gmra.mrb[0].mxu0 %v403
        %v405 = vpop.f32.mrb[0].mxu0
        %v406 = vadd.f32 %v328, %v405
        %v407 = vpop.f32.mrb[0].mxu0
        %408 = vdwg.mxu0
        %409 = vmatprep.subr.mxu0 0.0
        %v410 = vand.u32 %v159, 4294901760
        %411 = vmatpush1.xpose.msra.mxu0 %v410
        %412 = vmatprep.subr.mxu0 0.0
        %v413 = vand.u32 %v162, 4294901760
        %414 = vmatpush1.xpose.msra.mxu0 %v413
        %415 = vmatprep.subr.mxu0 0.0
        %v416 = vand.u32 %v165, 4294901760
        %417 = vmatpush1.xpose.msra.mxu0 %v416
        %418 = vmatprep.subr.mxu0 0.0
        %419 = vmatpush1.xpose.msra.mxu0 0.0
        %420 = vmatprep.subr.mxu0 0.0
        %421 = vmatpush1.xpose.msra.mxu0 0.0
        %422 = vmatprep.subr.mxu0 0.0
        %423 = vmatpush1.xpose.msra.mxu0 0.0
        %424 = vmatprep.subr.mxu0 0.0
        %425 = vmatpush1.xpose.msra.mxu0 0.0
        %426 = vmatprep.subr.mxu0 0.0
        %427 = vmatpush1.xpose.msra.mxu0 0.0
        %428 = vmatprep.subr.mxu0 0.0
        %429 = vmatpush1.xpose.msra.mxu0 0.0
        %430 = vmatprep.subr.mxu0 0.0
        %431 = vmatpush1.xpose.msra.mxu0 0.0
        %432 = vmatprep.subr.mxu0 0.0
        %433 = vmatpush1.xpose.msra.mxu0 0.0
        %434 = vmatprep.subr.mxu0 0.0
        %435 = vmatpush1.xpose.msra.mxu0 0.0
        %436 = vmatprep.subr.mxu0 0.0
        %437 = vmatpush1.xpose.msra.mxu0 0.0
        %438 = vmatprep.subr.mxu0 0.0
        %439 = vmatpush1.xpose.msra.mxu0 0.0
        %440 = vmatprep.subr.mxu0 0.0
        %441 = vmatpush1.xpose.msra.mxu0 0.0
        %442 = vmatprep.subr.mxu0 0.0
        %443 = vmatpush1.xpose.msra.mxu0 0.0
        %444 = vmatprep.subr.mxu0 0.0
        %445 = vmatpush1.xpose.msra.mxu0 0.0
        %446 = vmatprep.subr.mxu0 0.0
        %447 = vmatpush1.xpose.msra.mxu0 0.0
        %448 = vmatprep.subr.mxu0 0.0
        %449 = vmatpush1.xpose.msra.mxu0 0.0
        %450 = vmatprep.subr.mxu0 0.0
        %451 = vmatpush1.xpose.msra.mxu0 0.0
        %452 = vmatprep.subr.mxu0 0.0
        %453 = vmatpush1.xpose.msra.mxu0 0.0
        %454 = vmatprep.subr.mxu0 0.0
        %455 = vmatpush1.xpose.msra.mxu0 0.0
        %456 = vmatprep.subr.mxu0 0.0
        %457 = vmatpush1.xpose.msra.mxu0 0.0
        %458 = vmatprep.subr.mxu0 0.0
        %459 = vmatpush1.xpose.msra.mxu0 0.0
        %460 = vmatprep.subr.mxu0 0.0
        %461 = vmatpush1.xpose.msra.mxu0 0.0
        %462 = vmatprep.subr.mxu0 0.0
        %463 = vmatpush1.xpose.msra.mxu0 0.0
        %464 = vmatprep.subr.mxu0 0.0
        %465 = vmatpush1.xpose.msra.mxu0 0.0
        %466 = vmatprep.subr.mxu0 0.0
        %467 = vmatpush1.xpose.msra.mxu0 0.0
        %468 = vmatprep.subr.mxu0 0.0
        %469 = vmatpush1.xpose.msra.mxu0 0.0
        %470 = vmatprep.subr.mxu0 0.0
        %471 = vmatpush1.xpose.msra.mxu0 0.0
        %472 = vmatprep.subr.mxu0 0.0
        %473 = vmatpush1.xpose.msra.mxu0 0.0
        %474 = vmatprep.subr.mxu0 0.0
        %475 = vmatpush1.xpose.msra.mxu0 0.0
        %476 = vmatprep.mubr.f32.mxu0 0.0
        %v477 = vand.u32 %v156, 4294901760
        %v478 = vsub.f32 %v156, %v477
        %v479 = vand.u32 %v478, 4294901760
        %480 = vmatmul.mubr.f32.gmra.mrb[0].mxu0 %v479
        %v481 = vpop.f32.mrb[0].mxu0
        %v482 = vadd.f32 %v406, %v481
        %v483 = vpop.f32.mrb[0].mxu0
        %484 = vdwg.mxu0
        %485 = vmatprep.subr.mxu0 0.0
        %v486 = vand.u32 %v159, 4294901760
        %v487 = vsub.f32 %v159, %v486
        %v488 = vand.u32 %v487, 4294901760
        %489 = vmatpush1.xpose.msra.mxu0 %v488
        %490 = vmatprep.subr.mxu0 0.0
        %v491 = vand.u32 %v162, 4294901760
        %v492 = vsub.f32 %v162, %v491
        %v493 = vand.u32 %v492, 4294901760
        %494 = vmatpush1.xpose.msra.mxu0 %v493
        %495 = vmatprep.subr.mxu0 0.0
        %v496 = vand.u32 %v165, 4294901760
        %v497 = vsub.f32 %v165, %v496
        %v498 = vand.u32 %v497, 4294901760
        %499 = vmatpush1.xpose.msra.mxu0 %v498
        %500 = vmatprep.subr.mxu0 0.0
        %501 = vmatpush1.xpose.msra.mxu0 0.0
        %502 = vmatprep.subr.mxu0 0.0
        %503 = vmatpush1.xpose.msra.mxu0 0.0
        %504 = vmatprep.subr.mxu0 0.0
        %505 = vmatpush1.xpose.msra.mxu0 0.0
        %506 = vmatprep.subr.mxu0 0.0
        %507 = vmatpush1.xpose.msra.mxu0 0.0
        %508 = vmatprep.subr.mxu0 0.0
        %509 = vmatpush1.xpose.msra.mxu0 0.0
        %510 = vmatprep.subr.mxu0 0.0
        %511 = vmatpush1.xpose.msra.mxu0 0.0
        %512 = vmatprep.subr.mxu0 0.0
        %513 = vmatpush1.xpose.msra.mxu0 0.0
        %514 = vmatprep.subr.mxu0 0.0
        %515 = vmatpush1.xpose.msra.mxu0 0.0
        %516 = vmatprep.subr.mxu0 0.0
        %517 = vmatpush1.xpose.msra.mxu0 0.0
        %518 = vmatprep.subr.mxu0 0.0
        %519 = vmatpush1.xpose.msra.mxu0 0.0
        %520 = vmatprep.subr.mxu0 0.0
        %521 = vmatpush1.xpose.msra.mxu0 0.0
        %522 = vmatprep.subr.mxu0 0.0
        %523 = vmatpush1.xpose.msra.mxu0 0.0
        %524 = vmatprep.subr.mxu0 0.0
        %525 = vmatpush1.xpose.msra.mxu0 0.0
        %526 = vmatprep.subr.mxu0 0.0
        %527 = vmatpush1.xpose.msra.mxu0 0.0
        %528 = vmatprep.subr.mxu0 0.0
        %529 = vmatpush1.xpose.msra.mxu0 0.0
        %530 = vmatprep.subr.mxu0 0.0
        %531 = vmatpush1.xpose.msra.mxu0 0.0
        %532 = vmatprep.subr.mxu0 0.0
        %533 = vmatpush1.xpose.msra.mxu0 0.0
        %534 = vmatprep.subr.mxu0 0.0
        %535 = vmatpush1.xpose.msra.mxu0 0.0
        %536 = vmatprep.subr.mxu0 0.0
        %537 = vmatpush1.xpose.msra.mxu0 0.0
        %538 = vmatprep.subr.mxu0 0.0
        %539 = vmatpush1.xpose.msra.mxu0 0.0
        %540 = vmatprep.subr.mxu0 0.0
        %541 = vmatpush1.xpose.msra.mxu0 0.0
        %542 = vmatprep.subr.mxu0 0.0
        %543 = vmatpush1.xpose.msra.mxu0 0.0
        %544 = vmatprep.subr.mxu0 0.0
        %545 = vmatpush1.xpose.msra.mxu0 0.0
        %546 = vmatprep.subr.mxu0 0.0
        %547 = vmatpush1.xpose.msra.mxu0 0.0
        %548 = vmatprep.subr.mxu0 0.0
        %549 = vmatpush1.xpose.msra.mxu0 0.0
        %550 = vmatprep.subr.mxu0 0.0
        %551 = vmatpush1.xpose.msra.mxu0 0.0
        %552 = vmatprep.subr.mxu0 0.0
        %553 = vmatpush1.xpose.msra.mxu0 0.0
        %554 = vmatprep.subr.mxu0 0.0
        %555 = vmatpush1.xpose.msra.mxu0 0.0
        %556 = vmatprep.subr.mxu0 0.0
        %557 = vmatpush1.xpose.msra.mxu0 0.0
        %558 = vmatprep.mubr.f32.mxu0 0.0
        %v559 = vand.u32 %v156, 4294901760
        %560 = vmatmul.mubr.f32.gmra.mrb[0].mxu0 %v559
        %v561 = vpop.f32.mrb[0].mxu0
        %v562 = vadd.f32 %v482, %v561
        %v563 = vpop.f32.mrb[0].mxu0
        %564 = vdwg.mxu0
        %565 = vmatprep.subr.mxu0 0.0
        %v566 = vand.u32 %v159, 4294901760
        %567 = vmatpush1.xpose.msra.mxu0 %v566
        %568 = vmatprep.subr.mxu0 0.0
        %v569 = vand.u32 %v162, 4294901760
        %570 = vmatpush1.xpose.msra.mxu0 %v569
        %571 = vmatprep.subr.mxu0 0.0
        %v572 = vand.u32 %v165, 4294901760
        %573 = vmatpush1.xpose.msra.mxu0 %v572
        %574 = vmatprep.subr.mxu0 0.0
        %575 = vmatpush1.xpose.msra.mxu0 0.0
        %576 = vmatprep.subr.mxu0 0.0
        %577 = vmatpush1.xpose.msra.mxu0 0.0
        %578 = vmatprep.subr.mxu0 0.0
        %579 = vmatpush1.xpose.msra.mxu0 0.0
        %580 = vmatprep.subr.mxu0 0.0
        %581 = vmatpush1.xpose.msra.mxu0 0.0
        %582 = vmatprep.subr.mxu0 0.0
        %583 = vmatpush1.xpose.msra.mxu0 0.0
        %584 = vmatprep.subr.mxu0 0.0
        %585 = vmatpush1.xpose.msra.mxu0 0.0
        %586 = vmatprep.subr.mxu0 0.0
        %587 = vmatpush1.xpose.msra.mxu0 0.0
        %588 = vmatprep.subr.mxu0 0.0
        %589 = vmatpush1.xpose.msra.mxu0 0.0
        %590 = vmatprep.subr.mxu0 0.0
        %591 = vmatpush1.xpose.msra.mxu0 0.0
        %592 = vmatprep.subr.mxu0 0.0
        %593 = vmatpush1.xpose.msra.mxu0 0.0
        %594 = vmatprep.subr.mxu0 0.0
        %595 = vmatpush1.xpose.msra.mxu0 0.0
        %596 = vmatprep.subr.mxu0 0.0
        %597 = vmatpush1.xpose.msra.mxu0 0.0
        %598 = vmatprep.subr.mxu0 0.0
        %599 = vmatpush1.xpose.msra.mxu0 0.0
        %600 = vmatprep.subr.mxu0 0.0
        %601 = vmatpush1.xpose.msra.mxu0 0.0
        %602 = vmatprep.subr.mxu0 0.0
        %603 = vmatpush1.xpose.msra.mxu0 0.0
        %604 = vmatprep.subr.mxu0 0.0
        %605 = vmatpush1.xpose.msra.mxu0 0.0
        %606 = vmatprep.subr.mxu0 0.0
        %607 = vmatpush1.xpose.msra.mxu0 0.0
        %608 = vmatprep.subr.mxu0 0.0
        %609 = vmatpush1.xpose.msra.mxu0 0.0
        %610 = vmatprep.subr.mxu0 0.0
        %611 = vmatpush1.xpose.msra.mxu0 0.0
        %612 = vmatprep.subr.mxu0 0.0
        %613 = vmatpush1.xpose.msra.mxu0 0.0
        %614 = vmatprep.subr.mxu0 0.0
        %615 = vmatpush1.xpose.msra.mxu0 0.0
        %616 = vmatprep.subr.mxu0 0.0
        %617 = vmatpush1.xpose.msra.mxu0 0.0
        %618 = vmatprep.subr.mxu0 0.0
        %619 = vmatpush1.xpose.msra.mxu0 0.0
        %620 = vmatprep.subr.mxu0 0.0
        %621 = vmatpush1.xpose.msra.mxu0 0.0
        %622 = vmatprep.subr.mxu0 0.0
        %623 = vmatpush1.xpose.msra.mxu0 0.0
        %624 = vmatprep.subr.mxu0 0.0
        %625 = vmatpush1.xpose.msra.mxu0 0.0
        %626 = vmatprep.subr.mxu0 0.0
        %627 = vmatpush1.xpose.msra.mxu0 0.0
        %628 = vmatprep.subr.mxu0 0.0
        %629 = vmatpush1.xpose.msra.mxu0 0.0
        %630 = vmatprep.subr.mxu0 0.0
        %631 = vmatpush1.xpose.msra.mxu0 0.0
        %632 = vmatprep.mubr.f32.mxu0 0.0
        %v633 = vand.u32 %v156, 4294901760
        %634 = vmatmul.mubr.f32.gmra.mrb[0].mxu0 %v633
        %v635 = vpop.f32.mrb[0].mxu0
        %v636 = vadd.f32 %v562, %v635
        %v637 = vpop.f32.mrb[0].mxu0
        %638 = vdwg.mxu0
        %v639 = vmul.f32 %v636, 20.0
        %v640 = vmul.f32 %v639, 1.442695
        %v641 = vpow.pop %v640
        %v642 = vlaneseq
        %v643 = vshrl.u32 %v642, 7
        %v644 = vstv %s148
        %v645 = vadd.s32 %v643, %v644
        %vm646 = vcmp.lt.s32.totalorder %v645, 12
        %v647 = vsub.s32 %v645, 12
        %v648 = vsel %vm646, %v645, %v647
        %v649 = vadd.s32 %v645, 12
        %v650 = vsel %vm646, %v649, %v647
        %v651 = vlaneseq
        %v652 = vand.u32 %v651, 127
        %vm653 = vcmp.eq.s32.totalorder %v652, %v650
        %v654 = vsel %vm653, %v639, 0.0
        %vm655 = vcmask 195584
        %v656 = vsel %vm655, %v654, 0.0
        %657 = vadd.xlane.f32.xlu0 %v656
        %v658 = vpop.xlane.xlu0 %657
        %v659 = vmul.f32 %v658, 1.442695
        %v660 = vpow.pop %v659
        %vm661 = vcmp.eq.s32.totalorder %v652, %v648
        %v662 = vadd.s32 %v648, 12
        %vm663 = vcmp.eq.s32.totalorder %v652, %v662
        %vm664 = vmor %vm661, %vm663
        %v665 = vsel %vm664, 0.0, %v641
        %v666 = vsel %vm655, %v665, 0.0
        %667 = vadd.xlane.f32.xlu0 %v666
        %v668 = vpop.xlane.xlu0 %667
        %v669 = vadd.f32 %v668, %v660
        %v670 = vlog2.pop %v669
        %v671 = vmul.f32 %v670, 0.6931472
        %v672 = vsub.f32 %v671, %v658
        %vm673 = vcmp.eq.s32.totalorder %v652, 0
        %vm674 = vcmp.eq.s32.totalorder %v652, 1
        %v675 = vsel %vm674, %v668, %v672
        %v676 = vsel %vm673, %v660, %v675
        %vm677 = vcmask 23552
        %678 = vst.msk [vmem:[%s147] sm:$0xff] %vm677, %v676
        %vm679 = vcmp.lt.s32.totalorder %v652, %v648
        %v680 = vadd.s32 %v648, 11
        %vm681 = vcmp.lt.s32.totalorder %v652, %v680
        %683 = vrot.lane.b32.xlu0 %v641, 127
        %v684 = vpop.permute.xlu0 %683
        %686 = vrot.lane.b32.xlu0 %v641, 126
        %v687 = vpop.permute.xlu0 %686
        %v689 = vsel %vm681, %v684, %v687
        %v690 = vsel %vm679, %v641, %v689
        %691 = vst [vmem:[%s143] sm:$0xff] 0.0
        %vm692 = vcmask 179200
        %693 = vst.msk [vmem:[%s143] sm:$0xff] %vm692, %v690
        %p694 = scmp.lt.s32.totalorder %s18, 2
        %s695 = scalar_select %p694, %s18, 2
        %s696 = smul.addr %s695, 8
        %s697 = scalar_lea.vmem %s1, %s696
        %s698 = sand.u32 %s73, 1
        %s699 = scalar_lea.sflag [#allocation4], %s698
        %s700 = sand.u32 %s73, 1
        %s701 = smul.addr %s700, 8
        %s702 = scalar_lea.vmem [#allocation5], %s701
        // Predicated region
        $region29: #{tpu_custom_call.1} parent=23 // pred_check
          %p703 = pneg %p57
        $region30: #{tpu_custom_call.1} parent=23 // pred_check_branch
          %705 = sbr.rel (%p703) target = $region32
        $region31: #{tpu_custom_call.1} parent=23 // pred_region
          _
        $region32: #{tpu_custom_call.1} parent=23 // pred_fallthru
          _
        // Predicated region
        $region33: #{tpu_custom_call.1} parent=23 // pred_check
          %p706 = pneg %p83
        $region34: #{tpu_custom_call.1} parent=23 // pred_check_branch
          %708 = sbr.rel (%p706) target = $region36
        $region35: #{tpu_custom_call.1} parent=23 // pred_region
          %s710 = ssub.s32 128, 128
          %711 = vsyncadd %s699, %s710
          %s712 = smul.addr %s18, 128
          %s713 = scalar_lea.hbm %s2, %s712
          %s715 = sshll.u32 %s702, 4
          %s716 = int_to_ptr.vmem [resolvable:$true] %s715
          %718 = dma.vmem_to_hbm [thread:$0]  %s716, 128, %s713, %s699
        $region36: #{tpu_custom_call.1} parent=23 // pred_fallthru
          _
      $region24: #{tpu_custom_call.1} parent=5 // pred_fallthru
        _
      %p719 = scmp.le.s32.totalorder 2, %s13
      // Predicated region
      $region37: #{tpu_custom_call.1} parent=5 // pred_check
        %p720 = pneg %p719
      $region38: #{tpu_custom_call.1} parent=5 // pred_check_branch
        %722 = sbr.rel (%p720) target = $region40
      $region39: #{tpu_custom_call.1} parent=5 // pred_region
        %s723 = ssub.s32 %s13, 2
        // Predicated region
        $region41: #{tpu_custom_call.1} parent=39 // pred_check
          %p724 = pneg %p63
        $region42: #{tpu_custom_call.1} parent=39 // pred_check_branch
          %726 = sbr.rel (%p724) target = $region44
        $region43: #{tpu_custom_call.1} parent=39 // pred_region
          %p727 = scmp.lt.s32.totalorder %s19, 2
          %s728 = scalar_select %p727, %s19, 2
          %s729 = smul.addr %s728, 8
          %s730 = scalar_lea.vmem %s1, %s729
        $region44: #{tpu_custom_call.1} parent=39 // pred_fallthru
          _
        // Predicated region
        $region45: #{tpu_custom_call.1} parent=39 // pred_check
          %p731 = pneg %p89
        $region46: #{tpu_custom_call.1} parent=39 // pred_check_branch
          %733 = sbr.rel (%p731) target = $region48
        $region47: #{tpu_custom_call.1} parent=39 // pred_region
          %s734 = sand.u32 %s74, 1
          %s735 = scalar_lea.sflag [#allocation4], %s734
          %s736 = sand.u32 %s74, 1
          %s737 = smul.addr %s736, 8
          %s738 = scalar_lea.vmem [#allocation5], %s737
          %739 = dma.done %s735, 128
        $region48: #{tpu_custom_call.1} parent=39 // pred_fallthru
          _
      $region40: #{tpu_custom_call.1} parent=5 // pred_fallthru
        _
    $region6: #{tpu_custom_call.1} parent=1 // loop_footer
      %s17 = sadd.s32 1, %s13
    $region7: #{tpu_custom_call.1} parent=1 // loop_footer_branch
      %12 = sbr.rel target = $region3
    $region8: #{tpu_custom_call.1} parent=1 // loop_exit
      _
    %740 = vsyncpa [#allocation3], 1
    %s741 = scalar_lea.sflag [#allocation3], 1
    %742 = vsyncpa %s741, 1
    %743 = vsyncpa [#allocation4], 1
    %s744 = scalar_lea.sflag [#allocation4], 1
    %745 = vsyncpa %s744, 1

</llo_original>
